<compile_context>
chip_gen: v5e
topology: v5e:2x2
jax: 0.10.0
libtpu: 0.0.40
codegen_flags: <defaults>
</compile_context>

<pallas_src>
import jax
import jax.numpy as jnp
from jax.experimental import pallas as pl
from jax.experimental.pallas import tpu as pltpu

LATENT_DIMS = 8
HIDDEN = 256
IN_FEATURES = 2    # FireEvac data points are (x, y) pairs
OUT_FEATURES = 2


def _round_up(n, m):
    return (n + m - 1) // m * m


def vae_kernel(x_ref, eps_ref,
               e_w1, e_b1, e_w2, e_b2, e_w3, e_b3,
               e_msw, e_msb,
               d_w1, d_b1, d_w2, d_b2, d_ow, d_ob,
               out_ref, kl_ref):
    f32 = jnp.float32
    bf16 = jnp.bfloat16
    x = x_ref[...]                                    # (TB, 2) f32

    # ---- Encoder ----
    # Layer 1 has K=2: do it on the VPU (an MXU pass would be 2/128 or 2/256
    # rows of weight padding plus a serialized weight load/drain).
    w1 = e_w1[...]
    h = jnp.maximum(x[:, 0:1] * w1[0:1, :] + x[:, 1:2] * w1[1:2, :] + e_b1[...], 0.0)

    h = jnp.maximum(jnp.dot(h.astype(bf16), e_w2[...],
                            preferred_element_type=f32) + e_b2[...], 0.0)
    h = jnp.maximum(jnp.dot(h.astype(bf16), e_w3[...],
                            preferred_element_type=f32) + e_b3[...], 0.0)

    # Fused mu / log-sigma heads: one (256, 16) matmul instead of two N=8 ones.
    ms = jnp.dot(h.astype(bf16), e_msw[...], preferred_element_type=f32) + e_msb[...]
    mu = ms[:, :LATENT_DIMS]
    log_sigma = ms[:, LATENT_DIMS:]
    sigma = jnp.exp(log_sigma)

    # Encoder side effect: self.kl = ((sigma**2 + mu**2)/2 - log(sigma)).sum()
    # Emit per-row partials (summed over latent dims); final batch reduction is
    # done outside the kernel so the batch grid axis stays "parallel".
    kl_ref[...] = jnp.sum((sigma * sigma + mu * mu) * 0.5 - log_sigma,
                          axis=1, keepdims=True)

    # ---- Reparameterization ----
    z = mu + sigma * eps_ref[...]

    # ---- Decoder ----
    d = jnp.maximum(jnp.dot(z.astype(bf16), d_w1[...],
                            preferred_element_type=f32) + d_b1[...], 0.0)
    d = jnp.maximum(jnp.dot(d.astype(bf16), d_w2[...],
                            preferred_element_type=f32) + d_b2[...], 0.0)
    # NOTE: in the reference Decoder.forward, linear_hidden3's ReLU output is
    # dead code (linear_out is applied to the hidden2 activation), so it is
    # intentionally not computed here.
    out_ref[...] = jax.nn.sigmoid(
        jnp.dot(d.astype(bf16), d_ow[...], preferred_element_type=f32) + d_ob[...])


def vae_forward(x, eps, params, *, block_b=256):
    """Returns (mu_decoder (B, 2) f32, kl scalar f32)."""
    B = x.shape[0]
    tb = _round_up(min(block_b, _round_up(B, 8)), 8)   # batch tile, multiple of 8
    b_pad = _round_up(B, tb)
    if b_pad != B:
        x = jnp.pad(x, ((0, b_pad - B), (0, 0)))
        eps = jnp.pad(eps, ((0, b_pad - B), (0, 0)))
    num_blocks = b_pad // tb

    batched = lambda feat: pl.BlockSpec((tb, feat), lambda i: (i, 0))
    pinned = lambda p: pl.BlockSpec(p.shape, lambda i: (0, 0))   # VMEM-resident

    recon, kl_rows = pl.pallas_call(
        vae_kernel,
        out_shape=(jax.ShapeDtypeStruct((b_pad, OUT_FEATURES), jnp.float32),
                   jax.ShapeDtypeStruct((b_pad, 1), jnp.float32)),
        grid=(num_blocks,),
        in_specs=[batched(IN_FEATURES), batched(LATENT_DIMS)]
                 + [pinned(p) for p in params],
        out_specs=(batched(OUT_FEATURES), batched(1)),
        compiler_params=pltpu.CompilerParams(
            dimension_semantics=("parallel",)),
    )(x, eps, *params)
    return recon[:B], jnp.sum(kl_rows[:B])


def _init_linear(key, fan_in, fan_out):
    """Deterministic PyTorch-like Linear init: U(-1/sqrt(fan_in), 1/sqrt(fan_in))."""
    kw, kb = jax.random.split(key)
    bound = 1.0 / float(fan_in) ** 0.5
    w = jax.random.uniform(kw, (fan_in, fan_out), jnp.float32, -bound, bound)
    b = jax.random.uniform(kb, (1, fan_out), jnp.float32, -bound, bound)
    return w, b


def init_params(key):
    ks = jax.random.split(key, 8)
    # Encoder
    e_w1, e_b1 = _init_linear(ks[0], IN_FEATURES, HIDDEN)
    e_w2, e_b2 = _init_linear(ks[1], HIDDEN, HIDDEN)
    e_w3, e_b3 = _init_linear(ks[2], HIDDEN, HIDDEN)
    e_muw, e_mub = _init_linear(ks[3], HIDDEN, LATENT_DIMS)
    e_sigw, e_sigb = _init_linear(ks[4], HIDDEN, LATENT_DIMS)
    # Decoder (linear_hidden3 and log_sigma exist in __init__ but do not affect
    # the returned forward value, so they are not materialized here).
    d_w1, d_b1 = _init_linear(ks[5], LATENT_DIMS, HIDDEN)
    d_w2, d_b2 = _init_linear(ks[6], HIDDEN, HIDDEN)
    d_ow, d_ob = _init_linear(ks[7], HIDDEN, OUT_FEATURES)

    # Fuse mu / sigma heads into a single (HIDDEN, 2*LATENT) weight.
    e_msw = jnp.concatenate([e_muw, e_sigw], axis=1)
    e_msb = jnp.concatenate([e_mub, e_sigb], axis=1)

    bf16 = jnp.bfloat16
    # Big matmul weights in bf16 (f32 accumulation in-kernel); layer-1 weight
    # stays f32 (it runs on the VPU), all biases stay f32.
    return (e_w1, e_b1,
            e_w2.astype(bf16), e_b2,
            e_w3.astype(bf16), e_b3,
            e_msw.astype(bf16), e_msb,
            d_w1.astype(bf16), d_b1,
            d_w2.astype(bf16), d_b2,
            d_ow.astype(bf16), d_ob)


def vae_forward_ref(x, eps, params):
    """Pure-JAX reference mirroring the kernel math (same bf16 operands)."""
    (e_w1, e_b1, e_w2, e_b2, e_w3, e_b3, e_msw, e_msb,
     d_w1, d_b1, d_w2, d_b2, d_ow, d_ob) = params
    f32, bf16 = jnp.float32, jnp.bfloat16
    dot = lambda a, w: jnp.dot(a.astype(bf16), w, preferred_element_type=f32)

    h = jnp.maximum(x[:, 0:1] * e_w1[0:1, :] + x[:, 1:2] * e_w1[1:2, :] + e_b1, 0.0)
    h = jnp.maximum(dot(h, e_w2) + e_b2, 0.0)
    h = jnp.maximum(dot(h, e_w3) + e_b3, 0.0)
    ms = dot(h, e_msw) + e_msb
    mu, log_sigma = ms[:, :LATENT_DIMS], ms[:, LATENT_DIMS:]
    sigma = jnp.exp(log_sigma)
    kl = jnp.sum((sigma * sigma + mu * mu) * 0.5 - log_sigma)
    z = mu + sigma * eps
    d = jnp.maximum(dot(z, d_w1) + d_b1, 0.0)
    d = jnp.maximum(dot(d, d_w2) + d_b2, 0.0)
    return jax.nn.sigmoid(dot(d, d_ow) + d_ob), kl


if __name__ == "__main__":
    key = jax.random.PRNGKey(0)
    k_x, k_eps, k_p = jax.random.split(key, 3)

    B = 50   # deliberately not a multiple of the batch tile (exercises padding)
    x = jax.random.normal(k_x, (B, IN_FEATURES), jnp.float32)
    # N(0,1) sample for the reparameterization trick (torch.distributions.Normal(0,1))
    eps = jax.random.normal(k_eps, (B, LATENT_DIMS), jnp.float32)
    params = init_params(k_p)

    # Small batch tile so the demo exercises a multi-step grid (grid=(2,)).
    mu_decoder, kl = vae_forward(x, eps, params, block_b=32)
    jax.block_until_ready((mu_decoder, kl))

    ref_out, ref_kl = vae_forward_ref(x, eps, params)
    assert mu_decoder.shape == (B, OUT_FEATURES)
    assert kl.shape == ()
    assert bool(jnp.all(jnp.isfinite(mu_decoder))) and bool(jnp.isfinite(kl))
    assert jnp.allclose(mu_decoder, ref_out, atol=2e-3, rtol=1e-3)
    assert jnp.allclose(kl, ref_kl, atol=1e-2, rtol=1e-3)
    print("KERNEL_OK")
</pallas_src>

<mosaic_0001>
module attributes {stable_mosaic.version = 11 : i64} {
  func.func @vae_kernel(%arg0: i32, %arg1: memref<32x2xf32, #tpu.memory_space<vmem>>, %arg2: memref<32x8xf32, #tpu.memory_space<vmem>>, %arg3: memref<2x256xf32, #tpu.memory_space<vmem>>, %arg4: memref<1x256xf32, #tpu.memory_space<vmem>>, %arg5: memref<256x256xbf16, #tpu.memory_space<vmem>>, %arg6: memref<1x256xf32, #tpu.memory_space<vmem>>, %arg7: memref<256x256xbf16, #tpu.memory_space<vmem>>, %arg8: memref<1x256xf32, #tpu.memory_space<vmem>>, %arg9: memref<256x16xbf16, #tpu.memory_space<vmem>>, %arg10: memref<1x16xf32, #tpu.memory_space<vmem>>, %arg11: memref<8x256xbf16, #tpu.memory_space<vmem>>, %arg12: memref<1x256xf32, #tpu.memory_space<vmem>>, %arg13: memref<256x256xbf16, #tpu.memory_space<vmem>>, %arg14: memref<1x256xf32, #tpu.memory_space<vmem>>, %arg15: memref<256x2xbf16, #tpu.memory_space<vmem>>, %arg16: memref<1x2xf32, #tpu.memory_space<vmem>>, %arg17: memref<32x2xf32, #tpu.memory_space<vmem>>, %arg18: memref<32x1xf32, #tpu.memory_space<vmem>>) attributes {dimension_semantics = [#tpu.dimension_semantics<parallel>], iteration_bounds = array<i64: 2>, scalar_prefetch = 0 : i64, scratch_operands = 0 : i64, tpu.core_type = #tpu.core_type<tc>, window_params = [{transform_indices = @transform_0, window_bounds = array<i64: 32, 2>}, {transform_indices = @transform_1, window_bounds = array<i64: 32, 8>}, {pipeline_mode = #tpu.pipeline_mode<synchronous>, transform_indices = @transform_2, window_bounds = array<i64: 2, 256>}, {pipeline_mode = #tpu.pipeline_mode<synchronous>, transform_indices = @transform_3, window_bounds = array<i64: 1, 256>}, {pipeline_mode = #tpu.pipeline_mode<synchronous>, transform_indices = @transform_4, window_bounds = array<i64: 256, 256>}, {pipeline_mode = #tpu.pipeline_mode<synchronous>, transform_indices = @transform_5, window_bounds = array<i64: 1, 256>}, {pipeline_mode = #tpu.pipeline_mode<synchronous>, transform_indices = @transform_6, window_bounds = array<i64: 256, 256>}, {pipeline_mode = #tpu.pipeline_mode<synchronous>, transform_indices = @transform_7, window_bounds = array<i64: 1, 256>}, {pipeline_mode = #tpu.pipeline_mode<synchronous>, transform_indices = @transform_8, window_bounds = array<i64: 256, 16>}, {pipeline_mode = #tpu.pipeline_mode<synchronous>, transform_indices = @transform_9, window_bounds = array<i64: 1, 16>}, {pipeline_mode = #tpu.pipeline_mode<synchronous>, transform_indices = @transform_10, window_bounds = array<i64: 8, 256>}, {pipeline_mode = #tpu.pipeline_mode<synchronous>, transform_indices = @transform_11, window_bounds = array<i64: 1, 256>}, {pipeline_mode = #tpu.pipeline_mode<synchronous>, transform_indices = @transform_12, window_bounds = array<i64: 256, 256>}, {pipeline_mode = #tpu.pipeline_mode<synchronous>, transform_indices = @transform_13, window_bounds = array<i64: 1, 256>}, {pipeline_mode = #tpu.pipeline_mode<synchronous>, transform_indices = @transform_14, window_bounds = array<i64: 256, 2>}, {pipeline_mode = #tpu.pipeline_mode<synchronous>, transform_indices = @transform_15, window_bounds = array<i64: 1, 2>}, {transform_indices = @transform_16, window_bounds = array<i64: 32, 2>}, {transform_indices = @transform_17, window_bounds = array<i64: 32, 1>}]} {
    %c0 = arith.constant 0 : index
    %c0_0 = arith.constant 0 : index
    %0 = vector.load %arg1[%c0, %c0_0] : memref<32x2xf32, #tpu.memory_space<vmem>>, vector<32x2xf32>
    %c0_1 = arith.constant 0 : index
    %c0_2 = arith.constant 0 : index
    %1 = vector.load %arg3[%c0_1, %c0_2] : memref<2x256xf32, #tpu.memory_space<vmem>>, vector<2x256xf32>
    %2 = vector.extract_strided_slice %0 {offsets = [0, 0], sizes = [32, 1], strides = [1, 1]} : vector<32x2xf32> to vector<32x1xf32>
    %3 = vector.extract_strided_slice %1 {offsets = [0, 0], sizes = [1, 256], strides = [1, 1]} : vector<2x256xf32> to vector<1x256xf32>
    %4 = vector.broadcast %2 : vector<32x1xf32> to vector<32x256xf32>
    %5 = vector.broadcast %3 : vector<1x256xf32> to vector<32x256xf32>
    %6 = arith.mulf %4, %5 : vector<32x256xf32>
    %7 = vector.extract_strided_slice %0 {offsets = [0, 1], sizes = [32, 1], strides = [1, 1]} : vector<32x2xf32> to vector<32x1xf32>
    %8 = vector.extract_strided_slice %1 {offsets = [1, 0], sizes = [1, 256], strides = [1, 1]} : vector<2x256xf32> to vector<1x256xf32>
    %9 = vector.broadcast %7 : vector<32x1xf32> to vector<32x256xf32>
    %10 = vector.broadcast %8 : vector<1x256xf32> to vector<32x256xf32>
    %11 = arith.mulf %9, %10 : vector<32x256xf32>
    %12 = arith.addf %6, %11 : vector<32x256xf32>
    %c0_3 = arith.constant 0 : index
    %c0_4 = arith.constant 0 : index
    %13 = vector.load %arg4[%c0_3, %c0_4] : memref<1x256xf32, #tpu.memory_space<vmem>>, vector<1x256xf32>
    %14 = vector.broadcast %13 : vector<1x256xf32> to vector<32x256xf32>
    %15 = arith.addf %12, %14 : vector<32x256xf32>
    %cst = arith.constant 0.000000e+00 : f32
    %16 = vector.broadcast %cst : f32 to vector<32x256xf32>
    %17 = arith.maximumf %15, %16 : vector<32x256xf32>
    %18 = arith.truncf %17 : vector<32x256xf32> to vector<32x256xbf16>
    %c0_5 = arith.constant 0 : index
    %c0_6 = arith.constant 0 : index
    %19 = vector.load %arg5[%c0_5, %c0_6] : memref<256x256xbf16, #tpu.memory_space<vmem>>, vector<256x256xbf16>
    %cst_7 = arith.constant dense<0.000000e+00> : vector<32x256xf32>
    %20 = tpu.matmul %18, %19, %cst_7 {dimension_numbers = #tpu.dot_dimension_numbers<[1], [0], [0], [1], [0, 0, 1, 1], [], []>} : vector<32x256xbf16>, vector<256x256xbf16>, vector<32x256xf32> -> vector<32x256xf32>
    %c0_8 = arith.constant 0 : index
    %c0_9 = arith.constant 0 : index
    %21 = vector.load %arg6[%c0_8, %c0_9] : memref<1x256xf32, #tpu.memory_space<vmem>>, vector<1x256xf32>
    %22 = vector.broadcast %21 : vector<1x256xf32> to vector<32x256xf32>
    %23 = arith.addf %20, %22 : vector<32x256xf32>
    %cst_10 = arith.constant 0.000000e+00 : f32
    %24 = vector.broadcast %cst_10 : f32 to vector<32x256xf32>
    %25 = arith.maximumf %23, %24 : vector<32x256xf32>
    %26 = arith.truncf %25 : vector<32x256xf32> to vector<32x256xbf16>
    %c0_11 = arith.constant 0 : index
    %c0_12 = arith.constant 0 : index
    %27 = vector.load %arg7[%c0_11, %c0_12] : memref<256x256xbf16, #tpu.memory_space<vmem>>, vector<256x256xbf16>
    %cst_13 = arith.constant dense<0.000000e+00> : vector<32x256xf32>
    %28 = tpu.matmul %26, %27, %cst_13 {dimension_numbers = #tpu.dot_dimension_numbers<[1], [0], [0], [1], [0, 0, 1, 1], [], []>} : vector<32x256xbf16>, vector<256x256xbf16>, vector<32x256xf32> -> vector<32x256xf32>
    %c0_14 = arith.constant 0 : index
    %c0_15 = arith.constant 0 : index
    %29 = vector.load %arg8[%c0_14, %c0_15] : memref<1x256xf32, #tpu.memory_space<vmem>>, vector<1x256xf32>
    %30 = vector.broadcast %29 : vector<1x256xf32> to vector<32x256xf32>
    %31 = arith.addf %28, %30 : vector<32x256xf32>
    %cst_16 = arith.constant 0.000000e+00 : f32
    %32 = vector.broadcast %cst_16 : f32 to vector<32x256xf32>
    %33 = arith.maximumf %31, %32 : vector<32x256xf32>
    %34 = arith.truncf %33 : vector<32x256xf32> to vector<32x256xbf16>
    %c0_17 = arith.constant 0 : index
    %c0_18 = arith.constant 0 : index
    %35 = vector.load %arg9[%c0_17, %c0_18] : memref<256x16xbf16, #tpu.memory_space<vmem>>, vector<256x16xbf16>
    %cst_19 = arith.constant dense<0.000000e+00> : vector<32x16xf32>
    %36 = tpu.matmul %34, %35, %cst_19 {dimension_numbers = #tpu.dot_dimension_numbers<[1], [0], [0], [1], [0, 0, 1, 1], [], []>} : vector<32x256xbf16>, vector<256x16xbf16>, vector<32x16xf32> -> vector<32x16xf32>
    %c0_20 = arith.constant 0 : index
    %c0_21 = arith.constant 0 : index
    %37 = vector.load %arg10[%c0_20, %c0_21] : memref<1x16xf32, #tpu.memory_space<vmem>>, vector<1x16xf32>
    %38 = vector.broadcast %37 : vector<1x16xf32> to vector<32x16xf32>
    %39 = arith.addf %36, %38 : vector<32x16xf32>
    %40 = vector.extract_strided_slice %39 {offsets = [0, 0], sizes = [32, 8], strides = [1, 1]} : vector<32x16xf32> to vector<32x8xf32>
    %41 = vector.extract_strided_slice %39 {offsets = [0, 8], sizes = [32, 8], strides = [1, 1]} : vector<32x16xf32> to vector<32x8xf32>
    %42 = math.exp %41 : vector<32x8xf32>
    %43 = arith.mulf %42, %42 : vector<32x8xf32>
    %44 = arith.mulf %40, %40 : vector<32x8xf32>
    %45 = arith.addf %43, %44 : vector<32x8xf32>
    %cst_22 = arith.constant 5.000000e-01 : f32
    %46 = vector.broadcast %cst_22 : f32 to vector<32x8xf32>
    %47 = arith.mulf %45, %46 : vector<32x8xf32>
    %48 = arith.subf %47, %41 : vector<32x8xf32>
    %cst_23 = arith.constant dense<0.000000e+00> : vector<32xf32>
    %49 = vector.multi_reduction <add>, %48, %cst_23 [1] : vector<32x8xf32> to vector<32xf32>
    %50 = vector.shape_cast %49 : vector<32xf32> to vector<32x1xf32>
    %c0_24 = arith.constant 0 : index
    %c0_25 = arith.constant 0 : index
    %51 = vector.load %arg18[%c0_24, %c0_25] : memref<32x1xf32, #tpu.memory_space<vmem>>, vector<32x1xf32>
    tpu.vector_store %arg18[%c0_24, %c0_25], %50 {strides = array<i32>} : memref<32x1xf32, #tpu.memory_space<vmem>>, vector<32x1xf32>,
    %c0_26 = arith.constant 0 : index
    %c0_27 = arith.constant 0 : index
    %52 = vector.load %arg2[%c0_26, %c0_27] : memref<32x8xf32, #tpu.memory_space<vmem>>, vector<32x8xf32>
    %53 = arith.mulf %42, %52 : vector<32x8xf32>
    %54 = arith.addf %40, %53 : vector<32x8xf32>
    %55 = arith.truncf %54 : vector<32x8xf32> to vector<32x8xbf16>
    %c0_28 = arith.constant 0 : index
    %c0_29 = arith.constant 0 : index
    %56 = vector.load %arg11[%c0_28, %c0_29] : memref<8x256xbf16, #tpu.memory_space<vmem>>, vector<8x256xbf16>
    %cst_30 = arith.constant dense<0.000000e+00> : vector<32x256xf32>
    %57 = tpu.matmul %55, %56, %cst_30 {dimension_numbers = #tpu.dot_dimension_numbers<[1], [0], [0], [1], [0, 0, 1, 1], [], []>} : vector<32x8xbf16>, vector<8x256xbf16>, vector<32x256xf32> -> vector<32x256xf32>
    %c0_31 = arith.constant 0 : index
    %c0_32 = arith.constant 0 : index
    %58 = vector.load %arg12[%c0_31, %c0_32] : memref<1x256xf32, #tpu.memory_space<vmem>>, vector<1x256xf32>
    %59 = vector.broadcast %58 : vector<1x256xf32> to vector<32x256xf32>
    %60 = arith.addf %57, %59 : vector<32x256xf32>
    %cst_33 = arith.constant 0.000000e+00 : f32
    %61 = vector.broadcast %cst_33 : f32 to vector<32x256xf32>
    %62 = arith.maximumf %60, %61 : vector<32x256xf32>
    %63 = arith.truncf %62 : vector<32x256xf32> to vector<32x256xbf16>
    %c0_34 = arith.constant 0 : index
    %c0_35 = arith.constant 0 : index
    %64 = vector.load %arg13[%c0_34, %c0_35] : memref<256x256xbf16, #tpu.memory_space<vmem>>, vector<256x256xbf16>
    %cst_36 = arith.constant dense<0.000000e+00> : vector<32x256xf32>
    %65 = tpu.matmul %63, %64, %cst_36 {dimension_numbers = #tpu.dot_dimension_numbers<[1], [0], [0], [1], [0, 0, 1, 1], [], []>} : vector<32x256xbf16>, vector<256x256xbf16>, vector<32x256xf32> -> vector<32x256xf32>
    %c0_37 = arith.constant 0 : index
    %c0_38 = arith.constant 0 : index
    %66 = vector.load %arg14[%c0_37, %c0_38] : memref<1x256xf32, #tpu.memory_space<vmem>>, vector<1x256xf32>
    %67 = vector.broadcast %66 : vector<1x256xf32> to vector<32x256xf32>
    %68 = arith.addf %65, %67 : vector<32x256xf32>
    %cst_39 = arith.constant 0.000000e+00 : f32
    %69 = vector.broadcast %cst_39 : f32 to vector<32x256xf32>
    %70 = arith.maximumf %68, %69 : vector<32x256xf32>
    %71 = arith.truncf %70 : vector<32x256xf32> to vector<32x256xbf16>
    %c0_40 = arith.constant 0 : index
    %c0_41 = arith.constant 0 : index
    %72 = vector.load %arg15[%c0_40, %c0_41] : memref<256x2xbf16, #tpu.memory_space<vmem>>, vector<256x2xbf16>
    %cst_42 = arith.constant dense<0.000000e+00> : vector<32x2xf32>
    %73 = tpu.matmul %71, %72, %cst_42 {dimension_numbers = #tpu.dot_dimension_numbers<[1], [0], [0], [1], [0, 0, 1, 1], [], []>} : vector<32x256xbf16>, vector<256x2xbf16>, vector<32x2xf32> -> vector<32x2xf32>
    %c0_43 = arith.constant 0 : index
    %c0_44 = arith.constant 0 : index
    %74 = vector.load %arg16[%c0_43, %c0_44] : memref<1x2xf32, #tpu.memory_space<vmem>>, vector<1x2xf32>
    %75 = vector.broadcast %74 : vector<1x2xf32> to vector<32x2xf32>
    %76 = arith.addf %73, %75 : vector<32x2xf32>
    %77 = arith.negf %76 : vector<32x2xf32>
    %78 = math.exp %77 : vector<32x2xf32>
    %cst_45 = arith.constant 1.000000e+00 : f32
    %79 = vector.broadcast %cst_45 : f32 to vector<32x2xf32>
    %80 = arith.addf %79, %78 : vector<32x2xf32>
    %81 = arith.divf %79, %80 : vector<32x2xf32>
    %c0_46 = arith.constant 0 : index
    %c0_47 = arith.constant 0 : index
    %82 = vector.load %arg17[%c0_46, %c0_47] : memref<32x2xf32, #tpu.memory_space<vmem>>, vector<32x2xf32>
    tpu.vector_store %arg17[%c0_46, %c0_47], %81 {strides = array<i32>} : memref<32x2xf32, #tpu.memory_space<vmem>>, vector<32x2xf32>,
    return
  }
  func.func @transform_0(%arg0: i32) -> (i32, i32) {
    %c0_i32 = arith.constant 0 : i32
    %c0_i32_0 = arith.constant 0 : i32
    return %arg0, %c0_i32 : i32, i32
  }
  func.func @transform_1(%arg0: i32) -> (i32, i32) {
    %c0_i32 = arith.constant 0 : i32
    %c0_i32_0 = arith.constant 0 : i32
    return %arg0, %c0_i32 : i32, i32
  }
  func.func @transform_2(%arg0: i32) -> (i32, i32) {
    %c0_i32 = arith.constant 0 : i32
    %c0_i32_0 = arith.constant 0 : i32
    %c0_i32_1 = arith.constant 0 : i32
    return %c0_i32, %c0_i32_0 : i32, i32
  }
  func.func @transform_3(%arg0: i32) -> (i32, i32) {
    %c0_i32 = arith.constant 0 : i32
    %c0_i32_0 = arith.constant 0 : i32
    %c0_i32_1 = arith.constant 0 : i32
    return %c0_i32, %c0_i32_0 : i32, i32
  }
  func.func @transform_4(%arg0: i32) -> (i32, i32) {
    %c0_i32 = arith.constant 0 : i32
    %c0_i32_0 = arith.constant 0 : i32
    %c0_i32_1 = arith.constant 0 : i32
    return %c0_i32, %c0_i32_0 : i32, i32
  }
  func.func @transform_5(%arg0: i32) -> (i32, i32) {
    %c0_i32 = arith.constant 0 : i32
    %c0_i32_0 = arith.constant 0 : i32
    %c0_i32_1 = arith.constant 0 : i32
    return %c0_i32, %c0_i32_0 : i32, i32
  }
  func.func @transform_6(%arg0: i32) -> (i32, i32) {
    %c0_i32 = arith.constant 0 : i32
    %c0_i32_0 = arith.constant 0 : i32
    %c0_i32_1 = arith.constant 0 : i32
    return %c0_i32, %c0_i32_0 : i32, i32
  }
  func.func @transform_7(%arg0: i32) -> (i32, i32) {
    %c0_i32 = arith.constant 0 : i32
    %c0_i32_0 = arith.constant 0 : i32
    %c0_i32_1 = arith.constant 0 : i32
    return %c0_i32, %c0_i32_0 : i32, i32
  }
  func.func @transform_8(%arg0: i32) -> (i32, i32) {
    %c0_i32 = arith.constant 0 : i32
    %c0_i32_0 = arith.constant 0 : i32
    %c0_i32_1 = arith.constant 0 : i32
    return %c0_i32, %c0_i32_0 : i32, i32
  }
  func.func @transform_9(%arg0: i32) -> (i32, i32) {
    %c0_i32 = arith.constant 0 : i32
    %c0_i32_0 = arith.constant 0 : i32
    %c0_i32_1 = arith.constant 0 : i32
    return %c0_i32, %c0_i32_0 : i32, i32
  }
  func.func @transform_10(%arg0: i32) -> (i32, i32) {
    %c0_i32 = arith.constant 0 : i32
    %c0_i32_0 = arith.constant 0 : i32
    %c0_i32_1 = arith.constant 0 : i32
    return %c0_i32, %c0_i32_0 : i32, i32
  }
  func.func @transform_11(%arg0: i32) -> (i32, i32) {
    %c0_i32 = arith.constant 0 : i32
    %c0_i32_0 = arith.constant 0 : i32
    %c0_i32_1 = arith.constant 0 : i32
    return %c0_i32, %c0_i32_0 : i32, i32
  }
  func.func @transform_12(%arg0: i32) -> (i32, i32) {
    %c0_i32 = arith.constant 0 : i32
    %c0_i32_0 = arith.constant 0 : i32
    %c0_i32_1 = arith.constant 0 : i32
    return %c0_i32, %c0_i32_0 : i32, i32
  }
  func.func @transform_13(%arg0: i32) -> (i32, i32) {
    %c0_i32 = arith.constant 0 : i32
    %c0_i32_0 = arith.constant 0 : i32
    %c0_i32_1 = arith.constant 0 : i32
    return %c0_i32, %c0_i32_0 : i32, i32
  }
  func.func @transform_14(%arg0: i32) -> (i32, i32) {
    %c0_i32 = arith.constant 0 : i32
    %c0_i32_0 = arith.constant 0 : i32
    %c0_i32_1 = arith.constant 0 : i32
    return %c0_i32, %c0_i32_0 : i32, i32
  }
  func.func @transform_15(%arg0: i32) -> (i32, i32) {
    %c0_i32 = arith.constant 0 : i32
    %c0_i32_0 = arith.constant 0 : i32
    %c0_i32_1 = arith.constant 0 : i32
    return %c0_i32, %c0_i32_0 : i32, i32
  }
  func.func @transform_16(%arg0: i32) -> (i32, i32) {
    %c0_i32 = arith.constant 0 : i32
    %c0_i32_0 = arith.constant 0 : i32
    return %arg0, %c0_i32 : i32, i32
  }
  func.func @transform_17(%arg0: i32) -> (i32, i32) {
    %c0_i32 = arith.constant 0 : i32
    %c0_i32_0 = arith.constant 0 : i32
    return %arg0, %c0_i32 : i32, i32
  }
}

</mosaic_0001>

<llo_original>
// kernel: tpu_custom_call.1
$region0: #{tpu_custom_call.1}
  #allocation0 [shape = 'u32[]', space=smem, size = 0x4, offset = 0x4, fixed_abs, tag = 'smem constant byte address 0x4 - core index']
  #allocation1 [shape = 'u32[72,128]{1,0:T(1,128)}', space=vmem, size = 0x9000, scoped, tag = 'internal scratch']
  %s0 = inlined_call_operand.vmem [shape: f32[64,2], index: 0, kind: input, shape index: {}]
  %s1 = inlined_call_operand.vmem [shape: f32[64,8], index: 1, kind: input, shape index: {}]
  %s2 = inlined_call_operand.vmem [shape: f32[2,256], index: 2, kind: input, shape index: {}]
  %s3 = inlined_call_operand.vmem [shape: f32[1,256], index: 3, kind: input, shape index: {}]
  %s4 = inlined_call_operand.vmem [shape: bf16[256,256], index: 4, kind: input, shape index: {}]
  %s5 = inlined_call_operand.vmem [shape: f32[1,256], index: 5, kind: input, shape index: {}]
  %s6 = inlined_call_operand.hbm [shape: bf16[256,256], index: 6, kind: input, shape index: {}]
  %s7 = inlined_call_operand.vmem [shape: f32[1,256], index: 7, kind: input, shape index: {}]
  %s8 = inlined_call_operand.vmem [shape: bf16[256,16], index: 8, kind: input, shape index: {}]
  %s9 = inlined_call_operand.vmem [shape: f32[1,16], index: 9, kind: input, shape index: {}]
  %s10 = inlined_call_operand.vmem [shape: bf16[8,256], index: 10, kind: input, shape index: {}]
  %s11 = inlined_call_operand.vmem [shape: f32[1,256], index: 11, kind: input, shape index: {}]
  %s12 = inlined_call_operand.hbm [shape: bf16[256,256], index: 12, kind: input, shape index: {}]
  %s13 = inlined_call_operand.vmem [shape: f32[1,256], index: 13, kind: input, shape index: {}]
  %s14 = inlined_call_operand.vmem [shape: bf16[256,2], index: 14, kind: input, shape index: {}]
  %s15 = inlined_call_operand.vmem [shape: f32[1,2], index: 15, kind: input, shape index: {}]
  %s16 = inlined_call_operand.vmem [shape: f32[64,2], index: 16, kind: output, shape index: {0}]
  %s17 = inlined_call_operand.vmem [shape: f32[64,1], index: 17, kind: output, shape index: {1}]
  %18 = xla_tuple %s16, %s17
  %s19 = sld [smem:[#allocation0]]
  $region113: #{tpu_custom_call.1} parent=0
    _
  %s21 = ssub.s32 1, %s19
  %s22 = scalar_select 0, %s21, %s19
  $region1: #{tpu_custom_call.1} parent=0
    #allocation2 [shape = 'u8[131072]{0}', space=vmem, size = 0x20000, scoped, tag = 'input window, operand 6, single buffered']
    #allocation3 [shape = 's32[2]{0}', space=sflag, size = 0x8, scoped, tag = 'scoped memory for tpu_custom_call.1']
    #allocation4 [shape = 'u8[131072]{0}', space=vmem, size = 0x20000, scoped, tag = 'input window, operand 12, single buffered']
    #allocation5 [shape = 's32[1]{0}', space=sflag, size = 0x4, scoped, tag = 'scoped memory for tpu_custom_call.1']
    %23 = vsyncpa [#allocation3], 0
    %24 = vsyncpa [#allocation5], 0
    loop: start=0, step=1, limit=4
    $region2: #{tpu_custom_call.1} parent=1 // loop_pre_header
      _
    $region3: #{tpu_custom_call.1} parent=1 // loop_header
      %s26 = sphi 0, %s30
      %p27 = scmp.ge.s32.totalorder %s26, 4
      %s36 = sphi 0, %s38
      %s39 = sphi 0, %s36
      %s40 = sphi 0, %s39
      %s56 = sphi 0, %s40
      %s62 = sphi 0, %s64
      %s65 = sphi 0, %s62
      %s66 = sphi 0, %s65
      %s82 = sphi 0, %s66
      %s86 = sphi 0, %s86
      %s88 = sphi 0, %s86
      %s89 = sphi 0, %s88
      %s103 = sphi 0, %s89
      %s107 = sphi 0, %s107
      %s109 = sphi 0, %s107
      %s110 = sphi 0, %s109
      %s124 = sphi 0, %s110
      %s128 = sphi 0, %s128
      %s130 = sphi 0, %s128
      %s131 = sphi 0, %s130
      %s145 = sphi 0, %s131
      %s149 = sphi 0, %s149
      %s151 = sphi 0, %s149
      %s152 = sphi 0, %s151
      %s166 = sphi 0, %s152
      %s170 = sphi 0, %s170
      %s172 = sphi 0, %s170
      %s173 = sphi 0, %s172
      %s187 = sphi 0, %s173
      %s191 = sphi 0, %s191
      %s193 = sphi 0, %s191
      %s194 = sphi 0, %s193
      %s208 = sphi 0, %s194
      %s212 = sphi 0, %s212
      %s214 = sphi 0, %s212
      %s215 = sphi 0, %s214
      %s229 = sphi 0, %s215
      %s233 = sphi 0, %s233
      %s235 = sphi 0, %s233
      %s236 = sphi 0, %s235
      %s250 = sphi 0, %s236
      %s254 = sphi 0, %s254
      %s256 = sphi 0, %s254
      %s257 = sphi 0, %s256
      %s271 = sphi 0, %s257
      %s275 = sphi 0, %s275
      %s277 = sphi 0, %s275
      %s278 = sphi 0, %s277
      %s292 = sphi 0, %s278
      %s296 = sphi 0, %s296
      %s298 = sphi 0, %s296
      %s299 = sphi 0, %s298
      %s313 = sphi 0, %s299
      %s317 = sphi 0, %s317
      %s319 = sphi 0, %s317
      %s320 = sphi 0, %s319
      %s334 = sphi 0, %s320
      %s338 = sphi 0, %s338
      %s340 = sphi 0, %s338
      %s341 = sphi 0, %s340
      %s355 = sphi 0, %s341
      %s359 = sphi 0, %s359
      %s361 = sphi 0, %s359
      %s362 = sphi 0, %s361
      %s376 = sphi 0, %s362
      %s382 = sphi 0, %s384
      %s385 = sphi 0, %s382
      %s386 = sphi 0, %s385
      %s402 = sphi 0, %s386
      %s408 = sphi 0, %s410
      %s411 = sphi 0, %s408
      %s412 = sphi 0, %s411
      %s428 = sphi 0, %s412
    $region4: #{tpu_custom_call.1} parent=1 // loop_header_branch
      %29 = sbr.rel (%p27) target = $region8
    $region5: #{tpu_custom_call.1} parent=1 // loop_body
      %s31 = ssub.s32 %s26, 1
      %s32 = ssub.s32 %s26, 2
      %s33 = sadd.s32 %s26, 1
      %s34 = ssub.s32 %s26, %s33
      %p35 = scmp.eq.s32.totalorder %s34, 0
      %s37 = sadd.s32 %s36, 1
      %s38 = scalar_select %p35, %s36, %s37
      %p41 = pneg %p35
      %p42 = scmp.eq.s32.totalorder %s26, 1
      %p43 = por %p41, %p42
      %p44 = scmp.ne.s32.totalorder %s36, %s39
      %p45 = scmp.eq.s32.totalorder %s26, 0
      %p46 = por %p44, %p45
      %p47 = scmp.ne.s32.totalorder %s36, %s39
      %p48 = scmp.eq.s32.totalorder %s31, 1
      %p49 = por %p47, %p48
      %p50 = scmp.ne.s32.totalorder %s39, %s40
      %p51 = scmp.eq.s32.totalorder %s31, 0
      %p52 = por %p50, %p51
      %p53 = scmp.ne.s32.totalorder %s39, %s40
      %p54 = scmp.eq.s32.totalorder %s32, 1
      %p55 = por %p53, %p54
      %p57 = scmp.ne.s32.totalorder %s40, %s56
      %p58 = scmp.eq.s32.totalorder %s32, 0
      %p59 = por %p57, %p58
      %s60 = ssub.s32 %s26, %s33
      %p61 = scmp.eq.s32.totalorder %s60, 0
      %s63 = sadd.s32 %s62, 1
      %s64 = scalar_select %p61, %s62, %s63
      %p67 = pneg %p61
      %p68 = scmp.eq.s32.totalorder %s26, 1
      %p69 = por %p67, %p68
      %p70 = scmp.ne.s32.totalorder %s62, %s65
      %p71 = scmp.eq.s32.totalorder %s26, 0
      %p72 = por %p70, %p71
      %p73 = scmp.ne.s32.totalorder %s62, %s65
      %p74 = scmp.eq.s32.totalorder %s31, 1
      %p75 = por %p73, %p74
      %p76 = scmp.ne.s32.totalorder %s65, %s66
      %p77 = scmp.eq.s32.totalorder %s31, 0
      %p78 = por %p76, %p77
      %p79 = scmp.ne.s32.totalorder %s65, %s66
      %p80 = scmp.eq.s32.totalorder %s32, 1
      %p81 = por %p79, %p80
      %p83 = scmp.ne.s32.totalorder %s66, %s82
      %p84 = scmp.eq.s32.totalorder %s32, 0
      %p85 = por %p83, %p84
      %s87 = sadd.s32 %s86, 1
      %p90 = scmp.eq.s32.totalorder %s26, 1
      %p91 = scmp.ne.s32.totalorder %s86, %s88
      %p92 = scmp.eq.s32.totalorder %s26, 0
      %p93 = por %p91, %p92
      %p94 = scmp.ne.s32.totalorder %s86, %s88
      %p95 = scmp.eq.s32.totalorder %s31, 1
      %p96 = por %p94, %p95
      %p97 = scmp.ne.s32.totalorder %s88, %s89
      %p98 = scmp.eq.s32.totalorder %s31, 0
      %p99 = por %p97, %p98
      %p100 = scmp.ne.s32.totalorder %s88, %s89
      %p101 = scmp.eq.s32.totalorder %s32, 1
      %p102 = por %p100, %p101
      %p104 = scmp.ne.s32.totalorder %s89, %s103
      %p105 = scmp.eq.s32.totalorder %s32, 0
      %p106 = por %p104, %p105
      %s108 = sadd.s32 %s107, 1
      %p111 = scmp.eq.s32.totalorder %s26, 1
      %p112 = scmp.ne.s32.totalorder %s107, %s109
      %p113 = scmp.eq.s32.totalorder %s26, 0
      %p114 = por %p112, %p113
      %p115 = scmp.ne.s32.totalorder %s107, %s109
      %p116 = scmp.eq.s32.totalorder %s31, 1
      %p117 = por %p115, %p116
      %p118 = scmp.ne.s32.totalorder %s109, %s110
      %p119 = scmp.eq.s32.totalorder %s31, 0
      %p120 = por %p118, %p119
      %p121 = scmp.ne.s32.totalorder %s109, %s110
      %p122 = scmp.eq.s32.totalorder %s32, 1
      %p123 = por %p121, %p122
      %p125 = scmp.ne.s32.totalorder %s110, %s124
      %p126 = scmp.eq.s32.totalorder %s32, 0
      %p127 = por %p125, %p126
      %s129 = sadd.s32 %s128, 1
      %p132 = scmp.eq.s32.totalorder %s26, 1
      %p133 = scmp.ne.s32.totalorder %s128, %s130
      %p134 = scmp.eq.s32.totalorder %s26, 0
      %p135 = por %p133, %p134
      %p136 = scmp.ne.s32.totalorder %s128, %s130
      %p137 = scmp.eq.s32.totalorder %s31, 1
      %p138 = por %p136, %p137
      %p139 = scmp.ne.s32.totalorder %s130, %s131
      %p140 = scmp.eq.s32.totalorder %s31, 0
      %p141 = por %p139, %p140
      %p142 = scmp.ne.s32.totalorder %s130, %s131
      %p143 = scmp.eq.s32.totalorder %s32, 1
      %p144 = por %p142, %p143
      %p146 = scmp.ne.s32.totalorder %s131, %s145
      %p147 = scmp.eq.s32.totalorder %s32, 0
      %p148 = por %p146, %p147
      %s150 = sadd.s32 %s149, 1
      %p153 = scmp.eq.s32.totalorder %s26, 1
      %p154 = scmp.ne.s32.totalorder %s149, %s151
      %p155 = scmp.eq.s32.totalorder %s26, 0
      %p156 = por %p154, %p155
      %p157 = scmp.ne.s32.totalorder %s149, %s151
      %p158 = scmp.eq.s32.totalorder %s31, 1
      %p159 = por %p157, %p158
      %p160 = scmp.ne.s32.totalorder %s151, %s152
      %p161 = scmp.eq.s32.totalorder %s31, 0
      %p162 = por %p160, %p161
      %p163 = scmp.ne.s32.totalorder %s151, %s152
      %p164 = scmp.eq.s32.totalorder %s32, 1
      %p165 = por %p163, %p164
      %p167 = scmp.ne.s32.totalorder %s152, %s166
      %p168 = scmp.eq.s32.totalorder %s32, 0
      %p169 = por %p167, %p168
      %s171 = sadd.s32 %s170, 1
      %p174 = scmp.eq.s32.totalorder %s26, 1
      %p175 = scmp.ne.s32.totalorder %s170, %s172
      %p176 = scmp.eq.s32.totalorder %s26, 0
      %p177 = por %p175, %p176
      %p178 = scmp.ne.s32.totalorder %s170, %s172
      %p179 = scmp.eq.s32.totalorder %s31, 1
      %p180 = por %p178, %p179
      %p181 = scmp.ne.s32.totalorder %s172, %s173
      %p182 = scmp.eq.s32.totalorder %s31, 0
      %p183 = por %p181, %p182
      %p184 = scmp.ne.s32.totalorder %s172, %s173
      %p185 = scmp.eq.s32.totalorder %s32, 1
      %p186 = por %p184, %p185
      %p188 = scmp.ne.s32.totalorder %s173, %s187
      %p189 = scmp.eq.s32.totalorder %s32, 0
      %p190 = por %p188, %p189
      %s192 = sadd.s32 %s191, 1
      %p195 = scmp.eq.s32.totalorder %s26, 1
      %p196 = scmp.ne.s32.totalorder %s191, %s193
      %p197 = scmp.eq.s32.totalorder %s26, 0
      %p198 = por %p196, %p197
      %p199 = scmp.ne.s32.totalorder %s191, %s193
      %p200 = scmp.eq.s32.totalorder %s31, 1
      %p201 = por %p199, %p200
      %p202 = scmp.ne.s32.totalorder %s193, %s194
      %p203 = scmp.eq.s32.totalorder %s31, 0
      %p204 = por %p202, %p203
      %p205 = scmp.ne.s32.totalorder %s193, %s194
      %p206 = scmp.eq.s32.totalorder %s32, 1
      %p207 = por %p205, %p206
      %p209 = scmp.ne.s32.totalorder %s194, %s208
      %p210 = scmp.eq.s32.totalorder %s32, 0
      %p211 = por %p209, %p210
      %s213 = sadd.s32 %s212, 1
      %p216 = scmp.eq.s32.totalorder %s26, 1
      %p217 = scmp.ne.s32.totalorder %s212, %s214
      %p218 = scmp.eq.s32.totalorder %s26, 0
      %p219 = por %p217, %p218
      %p220 = scmp.ne.s32.totalorder %s212, %s214
      %p221 = scmp.eq.s32.totalorder %s31, 1
      %p222 = por %p220, %p221
      %p223 = scmp.ne.s32.totalorder %s214, %s215
      %p224 = scmp.eq.s32.totalorder %s31, 0
      %p225 = por %p223, %p224
      %p226 = scmp.ne.s32.totalorder %s214, %s215
      %p227 = scmp.eq.s32.totalorder %s32, 1
      %p228 = por %p226, %p227
      %p230 = scmp.ne.s32.totalorder %s215, %s229
      %p231 = scmp.eq.s32.totalorder %s32, 0
      %p232 = por %p230, %p231
      %s234 = sadd.s32 %s233, 1
      %p237 = scmp.eq.s32.totalorder %s26, 1
      %p238 = scmp.ne.s32.totalorder %s233, %s235
      %p239 = scmp.eq.s32.totalorder %s26, 0
      %p240 = por %p238, %p239
      %p241 = scmp.ne.s32.totalorder %s233, %s235
      %p242 = scmp.eq.s32.totalorder %s31, 1
      %p243 = por %p241, %p242
      %p244 = scmp.ne.s32.totalorder %s235, %s236
      %p245 = scmp.eq.s32.totalorder %s31, 0
      %p246 = por %p244, %p245
      %p247 = scmp.ne.s32.totalorder %s235, %s236
      %p248 = scmp.eq.s32.totalorder %s32, 1
      %p249 = por %p247, %p248
      %p251 = scmp.ne.s32.totalorder %s236, %s250
      %p252 = scmp.eq.s32.totalorder %s32, 0
      %p253 = por %p251, %p252
      %s255 = sadd.s32 %s254, 1
      %p258 = scmp.eq.s32.totalorder %s26, 1
      %p259 = scmp.ne.s32.totalorder %s254, %s256
      %p260 = scmp.eq.s32.totalorder %s26, 0
      %p261 = por %p259, %p260
      %p262 = scmp.ne.s32.totalorder %s254, %s256
      %p263 = scmp.eq.s32.totalorder %s31, 1
      %p264 = por %p262, %p263
      %p265 = scmp.ne.s32.totalorder %s256, %s257
      %p266 = scmp.eq.s32.totalorder %s31, 0
      %p267 = por %p265, %p266
      %p268 = scmp.ne.s32.totalorder %s256, %s257
      %p269 = scmp.eq.s32.totalorder %s32, 1
      %p270 = por %p268, %p269
      %p272 = scmp.ne.s32.totalorder %s257, %s271
      %p273 = scmp.eq.s32.totalorder %s32, 0
      %p274 = por %p272, %p273
      %s276 = sadd.s32 %s275, 1
      %p279 = scmp.eq.s32.totalorder %s26, 1
      %p280 = scmp.ne.s32.totalorder %s275, %s277
      %p281 = scmp.eq.s32.totalorder %s26, 0
      %p282 = por %p280, %p281
      %p283 = scmp.ne.s32.totalorder %s275, %s277
      %p284 = scmp.eq.s32.totalorder %s31, 1
      %p285 = por %p283, %p284
      %p286 = scmp.ne.s32.totalorder %s277, %s278
      %p287 = scmp.eq.s32.totalorder %s31, 0
      %p288 = por %p286, %p287
      %p289 = scmp.ne.s32.totalorder %s277, %s278
      %p290 = scmp.eq.s32.totalorder %s32, 1
      %p291 = por %p289, %p290
      %p293 = scmp.ne.s32.totalorder %s278, %s292
      %p294 = scmp.eq.s32.totalorder %s32, 0
      %p295 = por %p293, %p294
      %s297 = sadd.s32 %s296, 1
      %p300 = scmp.eq.s32.totalorder %s26, 1
      %p301 = scmp.ne.s32.totalorder %s296, %s298
      %p302 = scmp.eq.s32.totalorder %s26, 0
      %p303 = por %p301, %p302
      %p304 = scmp.ne.s32.totalorder %s296, %s298
      %p305 = scmp.eq.s32.totalorder %s31, 1
      %p306 = por %p304, %p305
      %p307 = scmp.ne.s32.totalorder %s298, %s299
      %p308 = scmp.eq.s32.totalorder %s31, 0
      %p309 = por %p307, %p308
      %p310 = scmp.ne.s32.totalorder %s298, %s299
      %p311 = scmp.eq.s32.totalorder %s32, 1
      %p312 = por %p310, %p311
      %p314 = scmp.ne.s32.totalorder %s299, %s313
      %p315 = scmp.eq.s32.totalorder %s32, 0
      %p316 = por %p314, %p315
      %s318 = sadd.s32 %s317, 1
      %p321 = scmp.eq.s32.totalorder %s26, 1
      %p322 = scmp.ne.s32.totalorder %s317, %s319
      %p323 = scmp.eq.s32.totalorder %s26, 0
      %p324 = por %p322, %p323
      %p325 = scmp.ne.s32.totalorder %s317, %s319
      %p326 = scmp.eq.s32.totalorder %s31, 1
      %p327 = por %p325, %p326
      %p328 = scmp.ne.s32.totalorder %s319, %s320
      %p329 = scmp.eq.s32.totalorder %s31, 0
      %p330 = por %p328, %p329
      %p331 = scmp.ne.s32.totalorder %s319, %s320
      %p332 = scmp.eq.s32.totalorder %s32, 1
      %p333 = por %p331, %p332
      %p335 = scmp.ne.s32.totalorder %s320, %s334
      %p336 = scmp.eq.s32.totalorder %s32, 0
      %p337 = por %p335, %p336
      %s339 = sadd.s32 %s338, 1
      %p342 = scmp.eq.s32.totalorder %s26, 1
      %p343 = scmp.ne.s32.totalorder %s338, %s340
      %p344 = scmp.eq.s32.totalorder %s26, 0
      %p345 = por %p343, %p344
      %p346 = scmp.ne.s32.totalorder %s338, %s340
      %p347 = scmp.eq.s32.totalorder %s31, 1
      %p348 = por %p346, %p347
      %p349 = scmp.ne.s32.totalorder %s340, %s341
      %p350 = scmp.eq.s32.totalorder %s31, 0
      %p351 = por %p349, %p350
      %p352 = scmp.ne.s32.totalorder %s340, %s341
      %p353 = scmp.eq.s32.totalorder %s32, 1
      %p354 = por %p352, %p353
      %p356 = scmp.ne.s32.totalorder %s341, %s355
      %p357 = scmp.eq.s32.totalorder %s32, 0
      %p358 = por %p356, %p357
      %s360 = sadd.s32 %s359, 1
      %p363 = scmp.eq.s32.totalorder %s26, 1
      %p364 = scmp.ne.s32.totalorder %s359, %s361
      %p365 = scmp.eq.s32.totalorder %s26, 0
      %p366 = por %p364, %p365
      %p367 = scmp.ne.s32.totalorder %s359, %s361
      %p368 = scmp.eq.s32.totalorder %s31, 1
      %p369 = por %p367, %p368
      %p370 = scmp.ne.s32.totalorder %s361, %s362
      %p371 = scmp.eq.s32.totalorder %s31, 0
      %p372 = por %p370, %p371
      %p373 = scmp.ne.s32.totalorder %s361, %s362
      %p374 = scmp.eq.s32.totalorder %s32, 1
      %p375 = por %p373, %p374
      %p377 = scmp.ne.s32.totalorder %s362, %s376
      %p378 = scmp.eq.s32.totalorder %s32, 0
      %p379 = por %p377, %p378
      %s380 = ssub.s32 %s26, %s33
      %p381 = scmp.eq.s32.totalorder %s380, 0
      %s383 = sadd.s32 %s382, 1
      %s384 = scalar_select %p381, %s382, %s383
      %p387 = pneg %p381
      %p388 = scmp.eq.s32.totalorder %s26, 1
      %p389 = por %p387, %p388
      %p390 = scmp.ne.s32.totalorder %s382, %s385
      %p391 = scmp.eq.s32.totalorder %s26, 0
      %p392 = por %p390, %p391
      %p393 = scmp.ne.s32.totalorder %s382, %s385
      %p394 = scmp.eq.s32.totalorder %s31, 1
      %p395 = por %p393, %p394
      %p396 = scmp.ne.s32.totalorder %s385, %s386
      %p397 = scmp.eq.s32.totalorder %s31, 0
      %p398 = por %p396, %p397
      %p399 = scmp.ne.s32.totalorder %s385, %s386
      %p400 = scmp.eq.s32.totalorder %s32, 1
      %p401 = por %p399, %p400
      %p403 = scmp.ne.s32.totalorder %s386, %s402
      %p404 = scmp.eq.s32.totalorder %s32, 0
      %p405 = por %p403, %p404
      %s406 = ssub.s32 %s26, %s33
      %p407 = scmp.eq.s32.totalorder %s406, 0
      %s409 = sadd.s32 %s408, 1
      %s410 = scalar_select %p407, %s408, %s409
      %p413 = pneg %p407
      %p414 = scmp.eq.s32.totalorder %s26, 1
      %p415 = por %p413, %p414
      %p416 = scmp.ne.s32.totalorder %s408, %s411
      %p417 = scmp.eq.s32.totalorder %s26, 0
      %p418 = por %p416, %p417
      %p419 = scmp.ne.s32.totalorder %s408, %s411
      %p420 = scmp.eq.s32.totalorder %s31, 1
      %p421 = por %p419, %p420
      %p422 = scmp.ne.s32.totalorder %s411, %s412
      %p423 = scmp.eq.s32.totalorder %s31, 0
      %p424 = por %p422, %p423
      %p425 = scmp.ne.s32.totalorder %s411, %s412
      %p426 = scmp.eq.s32.totalorder %s32, 1
      %p427 = por %p425, %p426
      %p429 = scmp.ne.s32.totalorder %s412, %s428
      %p430 = scmp.eq.s32.totalorder %s32, 0
      %p431 = por %p429, %p430
      %p432 = scmp.le.s32.totalorder 1, %s26
      %p433 = scmp.lt.s32.totalorder %s26, 3
      %p434 = pnand %p432, %p433
      %p435 = pneg %p434
      // Predicated region
      $region9: #{tpu_custom_call.1} parent=5 // pred_check
        _
      $region10: #{tpu_custom_call.1} parent=5 // pred_check_branch
        %437 = sbr.rel (%p434) target = $region12
      $region11: #{tpu_custom_call.1} parent=5 // pred_region
        %s438 = ssub.s32 %s26, 1
        // Predicated region
        $region13: #{tpu_custom_call.1} parent=11 // pred_check
          %p439 = pneg %p99
        $region14: #{tpu_custom_call.1} parent=11 // pred_check_branch
          %441 = sbr.rel (%p439) target = $region16
        $region15: #{tpu_custom_call.1} parent=11 // pred_region
          _
        $region16: #{tpu_custom_call.1} parent=11 // pred_fallthru
          _
        // Predicated region
        $region17: #{tpu_custom_call.1} parent=11 // pred_check
          %p442 = pneg %p120
        $region18: #{tpu_custom_call.1} parent=11 // pred_check_branch
          %444 = sbr.rel (%p442) target = $region20
        $region19: #{tpu_custom_call.1} parent=11 // pred_region
          _
        $region20: #{tpu_custom_call.1} parent=11 // pred_fallthru
          _
        // Predicated region
        $region21: #{tpu_custom_call.1} parent=11 // pred_check
          %p445 = pneg %p141
        $region22: #{tpu_custom_call.1} parent=11 // pred_check_branch
          %447 = sbr.rel (%p445) target = $region24
        $region23: #{tpu_custom_call.1} parent=11 // pred_region
          _
        $region24: #{tpu_custom_call.1} parent=11 // pred_fallthru
          _
        // Predicated region
        $region25: #{tpu_custom_call.1} parent=11 // pred_check
          %p448 = pneg %p162
        $region26: #{tpu_custom_call.1} parent=11 // pred_check_branch
          %450 = sbr.rel (%p448) target = $region28
        $region27: #{tpu_custom_call.1} parent=11 // pred_region
          _
        $region28: #{tpu_custom_call.1} parent=11 // pred_fallthru
          _
        // Predicated region
        $region29: #{tpu_custom_call.1} parent=11 // pred_check
          %p451 = pneg %p183
        $region30: #{tpu_custom_call.1} parent=11 // pred_check_branch
          %453 = sbr.rel (%p451) target = $region32
        $region31: #{tpu_custom_call.1} parent=11 // pred_region
          %455 = vsyncadd [#allocation3], 0
          %s456 = sshll.u32 %s6, 4
          %s457 = int_to_ptr.hbm [resolvable:$true] %s456
          %s458 = sshll.u32 [#allocation2], 4
          %s459 = int_to_ptr.vmem [resolvable:$true] %s458
          %464 = dma.hbm_to_vmem [thread:$0]  %s457, 4096, %s459, [#allocation3], 128, 128, 8
        $region32: #{tpu_custom_call.1} parent=11 // pred_fallthru
          _
        // Predicated region
        $region33: #{tpu_custom_call.1} parent=11 // pred_check
          %p465 = pneg %p204
        $region34: #{tpu_custom_call.1} parent=11 // pred_check_branch
          %467 = sbr.rel (%p465) target = $region36
        $region35: #{tpu_custom_call.1} parent=11 // pred_region
          _
        $region36: #{tpu_custom_call.1} parent=11 // pred_fallthru
          _
        // Predicated region
        $region37: #{tpu_custom_call.1} parent=11 // pred_check
          %p468 = pneg %p225
        $region38: #{tpu_custom_call.1} parent=11 // pred_check_branch
          %470 = sbr.rel (%p468) target = $region40
        $region39: #{tpu_custom_call.1} parent=11 // pred_region
          _
        $region40: #{tpu_custom_call.1} parent=11 // pred_fallthru
          _
        // Predicated region
        $region41: #{tpu_custom_call.1} parent=11 // pred_check
          %p471 = pneg %p246
        $region42: #{tpu_custom_call.1} parent=11 // pred_check_branch
          %473 = sbr.rel (%p471) target = $region44
        $region43: #{tpu_custom_call.1} parent=11 // pred_region
          _
        $region44: #{tpu_custom_call.1} parent=11 // pred_fallthru
          _
        // Predicated region
        $region45: #{tpu_custom_call.1} parent=11 // pred_check
          %p474 = pneg %p267
        $region46: #{tpu_custom_call.1} parent=11 // pred_check_branch
          %476 = sbr.rel (%p474) target = $region48
        $region47: #{tpu_custom_call.1} parent=11 // pred_region
          _
        $region48: #{tpu_custom_call.1} parent=11 // pred_fallthru
          _
        // Predicated region
        $region49: #{tpu_custom_call.1} parent=11 // pred_check
          %p477 = pneg %p288
        $region50: #{tpu_custom_call.1} parent=11 // pred_check_branch
          %479 = sbr.rel (%p477) target = $region52
        $region51: #{tpu_custom_call.1} parent=11 // pred_region
          _
        $region52: #{tpu_custom_call.1} parent=11 // pred_fallthru
          _
        // Predicated region
        $region53: #{tpu_custom_call.1} parent=11 // pred_check
          %p480 = pneg %p309
        $region54: #{tpu_custom_call.1} parent=11 // pred_check_branch
          %482 = sbr.rel (%p480) target = $region56
        $region55: #{tpu_custom_call.1} parent=11 // pred_region
          %484 = vsyncadd [#allocation5], 0
          %s485 = sshll.u32 %s12, 4
          %s486 = int_to_ptr.hbm [resolvable:$true] %s485
          %s487 = sshll.u32 [#allocation4], 4
          %s488 = int_to_ptr.vmem [resolvable:$true] %s487
          %493 = dma.hbm_to_vmem [thread:$0]  %s486, 4096, %s488, [#allocation5], 128, 128, 8
        $region56: #{tpu_custom_call.1} parent=11 // pred_fallthru
          _
        // Predicated region
        $region57: #{tpu_custom_call.1} parent=11 // pred_check
          %p494 = pneg %p330
        $region58: #{tpu_custom_call.1} parent=11 // pred_check_branch
          %496 = sbr.rel (%p494) target = $region60
        $region59: #{tpu_custom_call.1} parent=11 // pred_region
          _
        $region60: #{tpu_custom_call.1} parent=11 // pred_fallthru
          _
        // Predicated region
        $region61: #{tpu_custom_call.1} parent=11 // pred_check
          %p497 = pneg %p351
        $region62: #{tpu_custom_call.1} parent=11 // pred_check_branch
          %499 = sbr.rel (%p497) target = $region64
        $region63: #{tpu_custom_call.1} parent=11 // pred_region
          _
        $region64: #{tpu_custom_call.1} parent=11 // pred_fallthru
          _
        // Predicated region
        $region65: #{tpu_custom_call.1} parent=11 // pred_check
          %p500 = pneg %p372
        $region66: #{tpu_custom_call.1} parent=11 // pred_check_branch
          %502 = sbr.rel (%p500) target = $region68
        $region67: #{tpu_custom_call.1} parent=11 // pred_region
          _
        $region68: #{tpu_custom_call.1} parent=11 // pred_fallthru
          _
      $region12: #{tpu_custom_call.1} parent=5 // pred_fallthru
        _
      %p503 = scmp.lt.s32.totalorder %s26, 2
      // Predicated region
      $region69: #{tpu_custom_call.1} parent=5 // pred_check
        %p504 = pneg %p503
      $region70: #{tpu_custom_call.1} parent=5 // pred_check_branch
        %506 = sbr.rel (%p504) target = $region72
      $region71: #{tpu_custom_call.1} parent=5 // pred_region
        // Predicated region
        $region73: #{tpu_custom_call.1} parent=71 // pred_check
          %p507 = pneg %p46
        $region74: #{tpu_custom_call.1} parent=71 // pred_check_branch
          %509 = sbr.rel (%p507) target = $region76
        $region75: #{tpu_custom_call.1} parent=71 // pred_region
          %s510 = smul.u32 4, %s26
          %p511 = scmp.lt.s32.totalorder %s510, 7
          %s512 = scalar_select %p511, %s510, 7
          %s513 = smul.addr %s512, 8
          %s514 = scalar_lea.vmem %s0, %s513
          %s515 = smul.u32 4, %s26
        $region76: #{tpu_custom_call.1} parent=71 // pred_fallthru
          _
        // Predicated region
        $region77: #{tpu_custom_call.1} parent=71 // pred_check
          %p516 = pneg %p72
        $region78: #{tpu_custom_call.1} parent=71 // pred_check_branch
          %518 = sbr.rel (%p516) target = $region80
        $region79: #{tpu_custom_call.1} parent=71 // pred_region
          %s519 = smul.u32 4, %s26
          %p520 = scmp.lt.s32.totalorder %s519, 7
          %s521 = scalar_select %p520, %s519, 7
          %s522 = smul.addr %s521, 8
          %s523 = scalar_lea.vmem %s1, %s522
          %s524 = smul.u32 4, %s26
        $region80: #{tpu_custom_call.1} parent=71 // pred_fallthru
          _
      $region72: #{tpu_custom_call.1} parent=5 // pred_fallthru
        _
      %p525 = scmp.le.s32.totalorder 1, %s26
      %p526 = scmp.lt.s32.totalorder %s26, 3
      %p527 = pnand %p525, %p526
      %p528 = pneg %p527
      // Predicated region
      $region81: #{tpu_custom_call.1} parent=5 // pred_check
        _
      $region82: #{tpu_custom_call.1} parent=5 // pred_check_branch
        %530 = sbr.rel (%p527) target = $region84
      $region83: #{tpu_custom_call.1} parent=5 // pred_region
        %s531 = ssub.s32 %s26, 1
        // Predicated region
        $region85: #{tpu_custom_call.1} parent=83 // pred_check
          %p532 = pneg %p183
        $region86: #{tpu_custom_call.1} parent=83 // pred_check_branch
          %534 = sbr.rel (%p532) target = $region88
        $region87: #{tpu_custom_call.1} parent=83 // pred_region
          %536 = dma.done [#allocation3], 4096
        $region88: #{tpu_custom_call.1} parent=83 // pred_fallthru
          _
        // Predicated region
        $region89: #{tpu_custom_call.1} parent=83 // pred_check
          %p537 = pneg %p309
        $region90: #{tpu_custom_call.1} parent=83 // pred_check_branch
          %539 = sbr.rel (%p537) target = $region92
        $region91: #{tpu_custom_call.1} parent=83 // pred_region
          %541 = dma.done [#allocation5], 4096
        $region92: #{tpu_custom_call.1} parent=83 // pred_fallthru
          _
        %s542 = smul.u32 4, %s31
        %p543 = scmp.lt.s32.totalorder %s542, 7
        %s544 = scalar_select %p543, %s542, 7
        %s545 = smul.addr %s544, 8
        %s546 = scalar_lea.vmem %s0, %s545
        %p547 = pneg %p52
        %p548 = pneg %p49
        %s549 = smul.u32 4, %s31
        %p550 = scmp.lt.s32.totalorder %s549, 7
        %s551 = scalar_select %p550, %s549, 7
        %s552 = smul.addr %s551, 8
        %s553 = scalar_lea.vmem %s1, %s552
        %p554 = pneg %p78
        %p555 = pneg %p75
        %p556 = pneg %p99
        %p557 = pneg %p96
        %p558 = pneg %p120
        %p559 = pneg %p117
        %p560 = pneg %p141
        %p561 = pneg %p138
        %p562 = pneg %p162
        %p563 = pneg %p159
        %p564 = pneg %p183
        %p565 = pneg %p180
        %p566 = pneg %p204
        %p567 = pneg %p201
        %p568 = pneg %p225
        %p569 = pneg %p222
        %p570 = pneg %p246
        %p571 = pneg %p243
        %p572 = pneg %p267
        %p573 = pneg %p264
        %p574 = pneg %p288
        %p575 = pneg %p285
        %p576 = pneg %p309
        %p577 = pneg %p306
        %p578 = pneg %p330
        %p579 = pneg %p327
        %p580 = pneg %p351
        %p581 = pneg %p348
        %p582 = pneg %p372
        %p583 = pneg %p369
        %p584 = pneg %p398
        %p585 = pneg %p395
        %s586 = smul.u32 4, %s31
        %p587 = scmp.lt.s32.totalorder %s586, 7
        %s588 = scalar_select %p587, %s586, 7
        %s589 = smul.addr %s588, 8
        %s590 = scalar_lea.vmem %s16, %s589
        %p591 = pneg %p424
        %p592 = pneg %p421
        %s593 = smul.u32 4, %s31
        %p594 = scmp.lt.s32.totalorder %s593, 7
        %s595 = scalar_select %p594, %s593, 7
        %s596 = smul.addr %s595, 8
        %s597 = scalar_lea.vmem %s17, %s596
        %s598 = smul.u32 4, %s31
        %p599 = scmp.lt.s32.totalorder %s598, 7
        %s600 = scalar_select %p599, %s598, 7
        %s601 = smul.addr %s600, 8
        %s602 = scalar_lea.vmem %s0, %s601
        %s603 = smul.u32 4, %s31
        %s604 = smul.u32 4, %s31
        %p605 = scmp.lt.s32.totalorder %s604, 7
        %s606 = scalar_select %p605, %s604, 7
        %s607 = smul.addr %s606, 8
        %s608 = scalar_lea.vmem %s1, %s607
        %s609 = smul.u32 4, %s31
        %s610 = smul.u32 4, %s31
        %p611 = scmp.lt.s32.totalorder %s610, 7
        %s612 = scalar_select %p611, %s610, 7
        %s613 = smul.addr %s612, 8
        %s614 = scalar_lea.vmem %s16, %s613
        %s615 = smul.u32 4, %s31
        %s616 = smul.u32 4, %s31
        %p617 = scmp.lt.s32.totalorder %s616, 7
        %s618 = scalar_select %p617, %s616, 7
        %s619 = smul.addr %s618, 8
        %s620 = scalar_lea.vmem %s17, %s619
        %s621 = smul.u32 4, %s31
        %v623 = vld [vmem:[%s602] sm:$0xff]
        %v624 = vld [vmem:[%s602 + $0x8] sm:$0xff]
        %v625 = vld [vmem:[%s602 + $0x10] sm:$0xff]
        %v626 = vld [vmem:[%s602 + $0x18] sm:$0xff]
        %v627 = vld [vmem:[%s2] sm:$0xf]
        %629 = vset.pattern.permute.xlu0 0
        %630 = vperm.xlu0 %629, %v623
        %v631 = vpop.permute.xlu0 %630
        %634 = vset.pattern.permute.xlu0 0
        %635 = vperm.xlu0 %634, %v624
        %v636 = vpop.permute.xlu0 %635
        %639 = vset.pattern.permute.xlu0 0
        %640 = vperm.xlu0 %639, %v625
        %v641 = vpop.permute.xlu0 %640
        %644 = vset.pattern.permute.xlu0 0
        %645 = vperm.xlu0 %644, %v626
        %v646 = vpop.permute.xlu0 %645
        %v649 = vperm.slane %v627, 0
        %v650 = vperm.slane %v627, 2
        %v653 = vperm.slane %v649, 0
        %v654 = vperm.slane %v650, 0
        %v655 = vmul.f32 %v631, %v653
        %v656 = vmul.f32 %v631, %v654
        %v657 = vmul.f32 %v636, %v653
        %v658 = vmul.f32 %v636, %v654
        %v659 = vmul.f32 %v641, %v653
        %v660 = vmul.f32 %v641, %v654
        %v661 = vmul.f32 %v646, %v653
        %v662 = vmul.f32 %v646, %v654
        %663 = vset.pattern.permute.xlu0 1
        %664 = vperm.xlu0 %663, %v623
        %v665 = vpop.permute.xlu0 %664
        %667 = vset.pattern.permute.xlu0 1
        %668 = vperm.xlu0 %667, %v624
        %v669 = vpop.permute.xlu0 %668
        %671 = vset.pattern.permute.xlu0 1
        %672 = vperm.xlu0 %671, %v625
        %v673 = vpop.permute.xlu0 %672
        %675 = vset.pattern.permute.xlu0 1
        %676 = vperm.xlu0 %675, %v626
        %v677 = vpop.permute.xlu0 %676
        %v679 = vperm.slane %v627, 1
        %v680 = vperm.slane %v627, 3
        %v683 = vperm.slane %v679, 1
        %v684 = vperm.slane %v680, 1
        %v685 = vmul.f32 %v665, %v683
        %v686 = vmul.f32 %v665, %v684
        %v687 = vmul.f32 %v669, %v683
        %v688 = vmul.f32 %v669, %v684
        %v689 = vmul.f32 %v673, %v683
        %v690 = vmul.f32 %v673, %v684
        %v691 = vmul.f32 %v677, %v683
        %v692 = vmul.f32 %v677, %v684
        %v693 = vadd.f32 %v655, %v685
        %v694 = vadd.f32 %v656, %v686
        %v695 = vadd.f32 %v657, %v687
        %v696 = vadd.f32 %v658, %v688
        %v697 = vadd.f32 %v659, %v689
        %v698 = vadd.f32 %v660, %v690
        %v699 = vadd.f32 %v661, %v691
        %v700 = vadd.f32 %v662, %v692
        %v701 = vld [vmem:[%s3] sm:$0x3]
        %v703 = vperm.slane %v701, 0
        %v704 = vperm.slane %v701, 1
        %v707 = vadd.f32 %v693, %v703
        %v708 = vadd.f32 %v694, %v704
        %v709 = vadd.f32 %v695, %v703
        %v710 = vadd.f32 %v696, %v704
        %v711 = vadd.f32 %v697, %v703
        %v712 = vadd.f32 %v698, %v704
        %v713 = vadd.f32 %v699, %v703
        %v714 = vadd.f32 %v700, %v704
        %v715 = vmax.f32 %v707, 0.0
        %v716 = vmax.f32 %v708, 0.0
        %v717 = vmax.f32 %v709, 0.0
        %v718 = vmax.f32 %v710, 0.0
        %v719 = vmax.f32 %v711, 0.0
        %v720 = vmax.f32 %v712, 0.0
        %v721 = vmax.f32 %v713, 0.0
        %v722 = vmax.f32 %v714, 0.0
        %v723 = vpack.c.bf16 %v717, %v715
        %v724 = vpack.c.bf16 %v718, %v716
        %v725 = vpack.c.bf16 %v721, %v719
        %v726 = vpack.c.bf16 %v722, %v720
        %v727 = vld [vmem:[%s4] sm:$0xff]
        %v728 = vld [vmem:[%s4 + $0x8] sm:$0xff]
        %v729 = vld [vmem:[%s4 + $0x10] sm:$0xff]
        %v730 = vld [vmem:[%s4 + $0x18] sm:$0xff]
        %v731 = vld [vmem:[%s4 + $0x20] sm:$0xff]
        %v732 = vld [vmem:[%s4 + $0x28] sm:$0xff]
        %v733 = vld [vmem:[%s4 + $0x30] sm:$0xff]
        %v734 = vld [vmem:[%s4 + $0x38] sm:$0xff]
        %v735 = vld [vmem:[%s4 + $0x40] sm:$0xff]
        %v736 = vld [vmem:[%s4 + $0x48] sm:$0xff]
        %v737 = vld [vmem:[%s4 + $0x50] sm:$0xff]
        %v738 = vld [vmem:[%s4 + $0x58] sm:$0xff]
        %v739 = vld [vmem:[%s4 + $0x60] sm:$0xff]
        %v740 = vld [vmem:[%s4 + $0x68] sm:$0xff]
        %v741 = vld [vmem:[%s4 + $0x70] sm:$0xff]
        %v742 = vld [vmem:[%s4 + $0x78] sm:$0xff]
        %v743 = vld [vmem:[%s4 + $0x80] sm:$0xff]
        %v744 = vld [vmem:[%s4 + $0x88] sm:$0xff]
        %v745 = vld [vmem:[%s4 + $0x90] sm:$0xff]
        %v746 = vld [vmem:[%s4 + $0x98] sm:$0xff]
        %v747 = vld [vmem:[%s4 + $0xa0] sm:$0xff]
        %v748 = vld [vmem:[%s4 + $0xa8] sm:$0xff]
        %v749 = vld [vmem:[%s4 + $0xb0] sm:$0xff]
        %v750 = vld [vmem:[%s4 + $0xb8] sm:$0xff]
        %v751 = vld [vmem:[%s4 + $0xc0] sm:$0xff]
        %v752 = vld [vmem:[%s4 + $0xc8] sm:$0xff]
        %v753 = vld [vmem:[%s4 + $0xd0] sm:$0xff]
        %v754 = vld [vmem:[%s4 + $0xd8] sm:$0xff]
        %v755 = vld [vmem:[%s4 + $0xe0] sm:$0xff]
        %v756 = vld [vmem:[%s4 + $0xe8] sm:$0xff]
        %v757 = vld [vmem:[%s4 + $0xf0] sm:$0xff]
        %v758 = vld [vmem:[%s4 + $0xf8] sm:$0xff]
        %v759 = vld [vmem:[%s5] sm:$0x3]
        %v761 = vperm.slane %v759, 0
        %v762 = vperm.slane %v759, 1
        %v797 = vunpack.c.l.b16 %v727
        %v798 = vunpack.c.h.b16 %v727
        %v799 = vunpack.c.l.b16 %v728
        %v800 = vunpack.c.h.b16 %v728
        %v801 = vunpack.c.l.b16 %v729
        %v802 = vunpack.c.h.b16 %v729
        %v803 = vunpack.c.l.b16 %v730
        %v804 = vunpack.c.h.b16 %v730
        %v805 = vunpack.c.l.b16 %v731
        %v806 = vunpack.c.h.b16 %v731
        %v807 = vunpack.c.l.b16 %v732
        %v808 = vunpack.c.h.b16 %v732
        %v809 = vunpack.c.l.b16 %v733
        %v810 = vunpack.c.h.b16 %v733
        %v811 = vunpack.c.l.b16 %v734
        %v812 = vunpack.c.h.b16 %v734
        %v813 = vunpack.c.l.b16 %v735
        %v814 = vunpack.c.h.b16 %v735
        %v815 = vunpack.c.l.b16 %v736
        %v816 = vunpack.c.h.b16 %v736
        %v817 = vunpack.c.l.b16 %v737
        %v818 = vunpack.c.h.b16 %v737
        %v819 = vunpack.c.l.b16 %v738
        %v820 = vunpack.c.h.b16 %v738
        %v821 = vunpack.c.l.b16 %v739
        %v822 = vunpack.c.h.b16 %v739
        %v823 = vunpack.c.l.b16 %v740
        %v824 = vunpack.c.h.b16 %v740
        %v825 = vunpack.c.l.b16 %v741
        %v826 = vunpack.c.h.b16 %v741
        %v827 = vunpack.c.l.b16 %v742
        %v828 = vunpack.c.h.b16 %v742
        %v829 = vunpack.c.l.b16 %v743
        %v830 = vunpack.c.h.b16 %v743
        %v831 = vunpack.c.l.b16 %v744
        %v832 = vunpack.c.h.b16 %v744
        %v833 = vunpack.c.l.b16 %v745
        %v834 = vunpack.c.h.b16 %v745
        %v835 = vunpack.c.l.b16 %v746
        %v836 = vunpack.c.h.b16 %v746
        %v837 = vunpack.c.l.b16 %v747
        %v838 = vunpack.c.h.b16 %v747
        %v839 = vunpack.c.l.b16 %v748
        %v840 = vunpack.c.h.b16 %v748
        %v841 = vunpack.c.l.b16 %v749
        %v842 = vunpack.c.h.b16 %v749
        %v843 = vunpack.c.l.b16 %v750
        %v844 = vunpack.c.h.b16 %v750
        %v845 = vunpack.c.l.b16 %v751
        %v846 = vunpack.c.h.b16 %v751
        %v847 = vunpack.c.l.b16 %v752
        %v848 = vunpack.c.h.b16 %v752
        %v849 = vunpack.c.l.b16 %v753
        %v850 = vunpack.c.h.b16 %v753
        %v851 = vunpack.c.l.b16 %v754
        %v852 = vunpack.c.h.b16 %v754
        %v853 = vunpack.c.l.b16 %v755
        %v854 = vunpack.c.h.b16 %v755
        %v855 = vunpack.c.l.b16 %v756
        %v856 = vunpack.c.h.b16 %v756
        %v857 = vunpack.c.l.b16 %v757
        %v858 = vunpack.c.h.b16 %v757
        %v859 = vunpack.c.l.b16 %v758
        %v860 = vunpack.c.h.b16 %v758
        %v861 = vpack.c.b16 %v799, %v797
        %v862 = vpack.c.b16 %v800, %v798
        %v863 = vpack.c.b16 %v803, %v801
        %v864 = vpack.c.b16 %v804, %v802
        %v865 = vpack.c.b16 %v807, %v805
        %v866 = vpack.c.b16 %v808, %v806
        %v867 = vpack.c.b16 %v811, %v809
        %v868 = vpack.c.b16 %v812, %v810
        %v869 = vpack.c.b16 %v815, %v813
        %v870 = vpack.c.b16 %v816, %v814
        %v871 = vpack.c.b16 %v819, %v817
        %v872 = vpack.c.b16 %v820, %v818
        %v873 = vpack.c.b16 %v823, %v821
        %v874 = vpack.c.b16 %v824, %v822
        %v875 = vpack.c.b16 %v827, %v825
        %v876 = vpack.c.b16 %v828, %v826
        %v877 = vpack.c.b16 %v831, %v829
        %v878 = vpack.c.b16 %v832, %v830
        %v879 = vpack.c.b16 %v835, %v833
        %v880 = vpack.c.b16 %v836, %v834
        %v881 = vpack.c.b16 %v839, %v837
        %v882 = vpack.c.b16 %v840, %v838
        %v883 = vpack.c.b16 %v843, %v841
        %v884 = vpack.c.b16 %v844, %v842
        %v885 = vpack.c.b16 %v847, %v845
        %v886 = vpack.c.b16 %v848, %v846
        %v887 = vpack.c.b16 %v851, %v849
        %v888 = vpack.c.b16 %v852, %v850
        %v889 = vpack.c.b16 %v855, %v853
        %v890 = vpack.c.b16 %v856, %v854
        %v891 = vpack.c.b16 %v859, %v857
        %v892 = vpack.c.b16 %v860, %v858
        %925 = vmatpush.bf16.msra.mxu0 %v875
        %926 = vmatpush.bf16.msra.mxu0 %v873
        %927 = vmatpush.bf16.msra.mxu0 %v871
        %928 = vmatpush.bf16.msra.mxu0 %v869
        %929 = vmatpush.bf16.msra.mxu0 %v867
        %930 = vmatpush.bf16.msra.mxu0 %v865
        %931 = vmatpush.bf16.msra.mxu0 %v863
        %932 = vmatpush.bf16.msra.mxu0 %v861
        %933 = vmatmul.bf16.gmra.mxu0 %v723
        %v934 = vpop.f32.mrf.mxu0
        %v935 = vadd.f32 %v761, %v934
        %v936 = vpop.f32.mrf.mxu0
        %v937 = vadd.f32 %v761, %v936
        %938 = vmatmul.bf16.gmra.mxu0 %v725
        %v939 = vpop.f32.mrf.mxu0
        %v940 = vadd.f32 %v761, %v939
        %v941 = vpop.f32.mrf.mxu0
        %v942 = vadd.f32 %v761, %v941
        %943 = vdwg.mxu0
        %944 = vmatpush.bf16.msra.mxu0 %v891
        %945 = vmatpush.bf16.msra.mxu0 %v889
        %946 = vmatpush.bf16.msra.mxu0 %v887
        %947 = vmatpush.bf16.msra.mxu0 %v885
        %948 = vmatpush.bf16.msra.mxu0 %v883
        %949 = vmatpush.bf16.msra.mxu0 %v881
        %950 = vmatpush.bf16.msra.mxu0 %v879
        %951 = vmatpush.bf16.msra.mxu0 %v877
        %952 = vmatmul.bf16.gmra.mxu0 %v724
        %v953 = vpop.f32.mrf.mxu0
        %v954 = vadd.f32 %v935, %v953
        %v955 = vpop.f32.mrf.mxu0
        %v956 = vadd.f32 %v937, %v955
        %957 = vmatmul.bf16.gmra.mxu0 %v726
        %v958 = vpop.f32.mrf.mxu0
        %v959 = vadd.f32 %v940, %v958
        %v960 = vpop.f32.mrf.mxu0
        %v961 = vadd.f32 %v942, %v960
        %962 = vdwg.mxu0
        %963 = vmatpush.bf16.msra.mxu0 %v876
        %964 = vmatpush.bf16.msra.mxu0 %v874
        %965 = vmatpush.bf16.msra.mxu0 %v872
        %966 = vmatpush.bf16.msra.mxu0 %v870
        %967 = vmatpush.bf16.msra.mxu0 %v868
        %968 = vmatpush.bf16.msra.mxu0 %v866
        %969 = vmatpush.bf16.msra.mxu0 %v864
        %970 = vmatpush.bf16.msra.mxu0 %v862
        %971 = vmatmul.bf16.gmra.mxu0 %v723
        %v972 = vpop.f32.mrf.mxu0
        %v973 = vadd.f32 %v762, %v972
        %v974 = vpop.f32.mrf.mxu0
        %v975 = vadd.f32 %v762, %v974
        %976 = vmatmul.bf16.gmra.mxu0 %v725
        %v977 = vpop.f32.mrf.mxu0
        %v978 = vadd.f32 %v762, %v977
        %v979 = vpop.f32.mrf.mxu0
        %v980 = vadd.f32 %v762, %v979
        %981 = vdwg.mxu0
        %982 = vmatpush.bf16.msra.mxu0 %v892
        %983 = vmatpush.bf16.msra.mxu0 %v890
        %984 = vmatpush.bf16.msra.mxu0 %v888
        %985 = vmatpush.bf16.msra.mxu0 %v886
        %986 = vmatpush.bf16.msra.mxu0 %v884
        %987 = vmatpush.bf16.msra.mxu0 %v882
        %988 = vmatpush.bf16.msra.mxu0 %v880
        %989 = vmatpush.bf16.msra.mxu0 %v878
        %990 = vmatmul.bf16.gmra.mxu0 %v724
        %v991 = vpop.f32.mrf.mxu0
        %v992 = vadd.f32 %v973, %v991
        %v993 = vpop.f32.mrf.mxu0
        %v994 = vadd.f32 %v975, %v993
        %995 = vmatmul.bf16.gmra.mxu0 %v726
        %v996 = vpop.f32.mrf.mxu0
        %v997 = vadd.f32 %v978, %v996
        %v998 = vpop.f32.mrf.mxu0
        %v999 = vadd.f32 %v980, %v998
        %1000 = vdwg.mxu0
        %v1001 = vmax.f32 %v954, 0.0
        %v1002 = vmax.f32 %v992, 0.0
        %v1003 = vmax.f32 %v956, 0.0
        %v1004 = vmax.f32 %v994, 0.0
        %v1005 = vmax.f32 %v959, 0.0
        %v1006 = vmax.f32 %v997, 0.0
        %v1007 = vmax.f32 %v961, 0.0
        %v1008 = vmax.f32 %v999, 0.0
        %v1009 = vpack.c.bf16 %v1003, %v1001
        %v1010 = vpack.c.bf16 %v1004, %v1002
        %v1011 = vpack.c.bf16 %v1007, %v1005
        %v1012 = vpack.c.bf16 %v1008, %v1006
        %v1013 = vld [vmem:[#allocation2] sm:$0xff]
        %v1014 = vld [vmem:[#allocation2 + $0x8] sm:$0xff]
        %v1015 = vld [vmem:[#allocation2 + $0x10] sm:$0xff]
        %v1016 = vld [vmem:[#allocation2 + $0x18] sm:$0xff]
        %v1017 = vld [vmem:[#allocation2 + $0x20] sm:$0xff]
        %v1018 = vld [vmem:[#allocation2 + $0x28] sm:$0xff]
        %v1019 = vld [vmem:[#allocation2 + $0x30] sm:$0xff]
        %v1020 = vld [vmem:[#allocation2 + $0x38] sm:$0xff]
        %v1021 = vld [vmem:[#allocation2 + $0x40] sm:$0xff]
        %v1022 = vld [vmem:[#allocation2 + $0x48] sm:$0xff]
        %v1023 = vld [vmem:[#allocation2 + $0x50] sm:$0xff]
        %v1024 = vld [vmem:[#allocation2 + $0x58] sm:$0xff]
        %v1025 = vld [vmem:[#allocation2 + $0x60] sm:$0xff]
        %v1026 = vld [vmem:[#allocation2 + $0x68] sm:$0xff]
        %v1027 = vld [vmem:[#allocation2 + $0x70] sm:$0xff]
        %v1028 = vld [vmem:[#allocation2 + $0x78] sm:$0xff]
        %v1029 = vld [vmem:[#allocation2 + $0x80] sm:$0xff]
        %v1030 = vld [vmem:[#allocation2 + $0x88] sm:$0xff]
        %v1031 = vld [vmem:[#allocation2 + $0x90] sm:$0xff]
        %v1032 = vld [vmem:[#allocation2 + $0x98] sm:$0xff]
        %v1033 = vld [vmem:[#allocation2 + $0xa0] sm:$0xff]
        %v1034 = vld [vmem:[#allocation2 + $0xa8] sm:$0xff]
        %v1035 = vld [vmem:[#allocation2 + $0xb0] sm:$0xff]
        %v1036 = vld [vmem:[#allocation2 + $0xb8] sm:$0xff]
        %v1037 = vld [vmem:[#allocation2 + $0xc0] sm:$0xff]
        %v1038 = vld [vmem:[#allocation2 + $0xc8] sm:$0xff]
        %v1039 = vld [vmem:[#allocation2 + $0xd0] sm:$0xff]
        %v1040 = vld [vmem:[#allocation2 + $0xd8] sm:$0xff]
        %v1041 = vld [vmem:[#allocation2 + $0xe0] sm:$0xff]
        %v1042 = vld [vmem:[#allocation2 + $0xe8] sm:$0xff]
        %v1043 = vld [vmem:[#allocation2 + $0xf0] sm:$0xff]
        %v1044 = vld [vmem:[#allocation2 + $0xf8] sm:$0xff]
        %v1045 = vld [vmem:[%s7] sm:$0x3]
        %v1047 = vperm.slane %v1045, 0
        %v1048 = vperm.slane %v1045, 1
        %v1083 = vunpack.c.l.b16 %v1013
        %v1084 = vunpack.c.h.b16 %v1013
        %v1085 = vunpack.c.l.b16 %v1014
        %v1086 = vunpack.c.h.b16 %v1014
        %v1087 = vunpack.c.l.b16 %v1015
        %v1088 = vunpack.c.h.b16 %v1015
        %v1089 = vunpack.c.l.b16 %v1016
        %v1090 = vunpack.c.h.b16 %v1016
        %v1091 = vunpack.c.l.b16 %v1017
        %v1092 = vunpack.c.h.b16 %v1017
        %v1093 = vunpack.c.l.b16 %v1018
        %v1094 = vunpack.c.h.b16 %v1018
        %v1095 = vunpack.c.l.b16 %v1019
        %v1096 = vunpack.c.h.b16 %v1019
        %v1097 = vunpack.c.l.b16 %v1020
        %v1098 = vunpack.c.h.b16 %v1020
        %v1099 = vunpack.c.l.b16 %v1021
        %v1100 = vunpack.c.h.b16 %v1021
        %v1101 = vunpack.c.l.b16 %v1022
        %v1102 = vunpack.c.h.b16 %v1022
        %v1103 = vunpack.c.l.b16 %v1023
        %v1104 = vunpack.c.h.b16 %v1023
        %v1105 = vunpack.c.l.b16 %v1024
        %v1106 = vunpack.c.h.b16 %v1024
        %v1107 = vunpack.c.l.b16 %v1025
        %v1108 = vunpack.c.h.b16 %v1025
        %v1109 = vunpack.c.l.b16 %v1026
        %v1110 = vunpack.c.h.b16 %v1026
        %v1111 = vunpack.c.l.b16 %v1027
        %v1112 = vunpack.c.h.b16 %v1027
        %v1113 = vunpack.c.l.b16 %v1028
        %v1114 = vunpack.c.h.b16 %v1028
        %v1115 = vunpack.c.l.b16 %v1029
        %v1116 = vunpack.c.h.b16 %v1029
        %v1117 = vunpack.c.l.b16 %v1030
        %v1118 = vunpack.c.h.b16 %v1030
        %v1119 = vunpack.c.l.b16 %v1031
        %v1120 = vunpack.c.h.b16 %v1031
        %v1121 = vunpack.c.l.b16 %v1032
        %v1122 = vunpack.c.h.b16 %v1032
        %v1123 = vunpack.c.l.b16 %v1033
        %v1124 = vunpack.c.h.b16 %v1033
        %v1125 = vunpack.c.l.b16 %v1034
        %v1126 = vunpack.c.h.b16 %v1034
        %v1127 = vunpack.c.l.b16 %v1035
        %v1128 = vunpack.c.h.b16 %v1035
        %v1129 = vunpack.c.l.b16 %v1036
        %v1130 = vunpack.c.h.b16 %v1036
        %v1131 = vunpack.c.l.b16 %v1037
        %v1132 = vunpack.c.h.b16 %v1037
        %v1133 = vunpack.c.l.b16 %v1038
        %v1134 = vunpack.c.h.b16 %v1038
        %v1135 = vunpack.c.l.b16 %v1039
        %v1136 = vunpack.c.h.b16 %v1039
        %v1137 = vunpack.c.l.b16 %v1040
        %v1138 = vunpack.c.h.b16 %v1040
        %v1139 = vunpack.c.l.b16 %v1041
        %v1140 = vunpack.c.h.b16 %v1041
        %v1141 = vunpack.c.l.b16 %v1042
        %v1142 = vunpack.c.h.b16 %v1042
        %v1143 = vunpack.c.l.b16 %v1043
        %v1144 = vunpack.c.h.b16 %v1043
        %v1145 = vunpack.c.l.b16 %v1044
        %v1146 = vunpack.c.h.b16 %v1044
        %v1147 = vpack.c.b16 %v1085, %v1083
        %v1148 = vpack.c.b16 %v1086, %v1084
        %v1149 = vpack.c.b16 %v1089, %v1087
        %v1150 = vpack.c.b16 %v1090, %v1088
        %v1151 = vpack.c.b16 %v1093, %v1091
        %v1152 = vpack.c.b16 %v1094, %v1092
        %v1153 = vpack.c.b16 %v1097, %v1095
        %v1154 = vpack.c.b16 %v1098, %v1096
        %v1155 = vpack.c.b16 %v1101, %v1099
        %v1156 = vpack.c.b16 %v1102, %v1100
        %v1157 = vpack.c.b16 %v1105, %v1103
        %v1158 = vpack.c.b16 %v1106, %v1104
        %v1159 = vpack.c.b16 %v1109, %v1107
        %v1160 = vpack.c.b16 %v1110, %v1108
        %v1161 = vpack.c.b16 %v1113, %v1111
        %v1162 = vpack.c.b16 %v1114, %v1112
        %v1163 = vpack.c.b16 %v1117, %v1115
        %v1164 = vpack.c.b16 %v1118, %v1116
        %v1165 = vpack.c.b16 %v1121, %v1119
        %v1166 = vpack.c.b16 %v1122, %v1120
        %v1167 = vpack.c.b16 %v1125, %v1123
        %v1168 = vpack.c.b16 %v1126, %v1124
        %v1169 = vpack.c.b16 %v1129, %v1127
        %v1170 = vpack.c.b16 %v1130, %v1128
        %v1171 = vpack.c.b16 %v1133, %v1131
        %v1172 = vpack.c.b16 %v1134, %v1132
        %v1173 = vpack.c.b16 %v1137, %v1135
        %v1174 = vpack.c.b16 %v1138, %v1136
        %v1175 = vpack.c.b16 %v1141, %v1139
        %v1176 = vpack.c.b16 %v1142, %v1140
        %v1177 = vpack.c.b16 %v1145, %v1143
        %v1178 = vpack.c.b16 %v1146, %v1144
        %1211 = vmatpush.bf16.msra.mxu0 %v1161
        %1212 = vmatpush.bf16.msra.mxu0 %v1159
        %1213 = vmatpush.bf16.msra.mxu0 %v1157
        %1214 = vmatpush.bf16.msra.mxu0 %v1155
        %1215 = vmatpush.bf16.msra.mxu0 %v1153
        %1216 = vmatpush.bf16.msra.mxu0 %v1151
        %1217 = vmatpush.bf16.msra.mxu0 %v1149
        %1218 = vmatpush.bf16.msra.mxu0 %v1147
        %1219 = vmatmul.bf16.gmra.mxu0 %v1009
        %v1220 = vpop.f32.mrf.mxu0
        %v1221 = vadd.f32 %v1047, %v1220
        %v1222 = vpop.f32.mrf.mxu0
        %v1223 = vadd.f32 %v1047, %v1222
        %1224 = vmatmul.bf16.gmra.mxu0 %v1011
        %v1225 = vpop.f32.mrf.mxu0
        %v1226 = vadd.f32 %v1047, %v1225
        %v1227 = vpop.f32.mrf.mxu0
        %v1228 = vadd.f32 %v1047, %v1227
        %1229 = vdwg.mxu0
        %1230 = vmatpush.bf16.msra.mxu0 %v1177
        %1231 = vmatpush.bf16.msra.mxu0 %v1175
        %1232 = vmatpush.bf16.msra.mxu0 %v1173
        %1233 = vmatpush.bf16.msra.mxu0 %v1171
        %1234 = vmatpush.bf16.msra.mxu0 %v1169
        %1235 = vmatpush.bf16.msra.mxu0 %v1167
        %1236 = vmatpush.bf16.msra.mxu0 %v1165
        %1237 = vmatpush.bf16.msra.mxu0 %v1163
        %1238 = vmatmul.bf16.gmra.mxu0 %v1010
        %v1239 = vpop.f32.mrf.mxu0
        %v1240 = vadd.f32 %v1221, %v1239
        %v1241 = vpop.f32.mrf.mxu0
        %v1242 = vadd.f32 %v1223, %v1241
        %1243 = vmatmul.bf16.gmra.mxu0 %v1012
        %v1244 = vpop.f32.mrf.mxu0
        %v1245 = vadd.f32 %v1226, %v1244
        %v1246 = vpop.f32.mrf.mxu0
        %v1247 = vadd.f32 %v1228, %v1246
        %1248 = vdwg.mxu0
        %1249 = vmatpush.bf16.msra.mxu0 %v1162
        %1250 = vmatpush.bf16.msra.mxu0 %v1160
        %1251 = vmatpush.bf16.msra.mxu0 %v1158
        %1252 = vmatpush.bf16.msra.mxu0 %v1156
        %1253 = vmatpush.bf16.msra.mxu0 %v1154
        %1254 = vmatpush.bf16.msra.mxu0 %v1152
        %1255 = vmatpush.bf16.msra.mxu0 %v1150
        %1256 = vmatpush.bf16.msra.mxu0 %v1148
        %1257 = vmatmul.bf16.gmra.mxu0 %v1009
        %v1258 = vpop.f32.mrf.mxu0
        %v1259 = vadd.f32 %v1048, %v1258
        %v1260 = vpop.f32.mrf.mxu0
        %v1261 = vadd.f32 %v1048, %v1260
        %1262 = vmatmul.bf16.gmra.mxu0 %v1011
        %v1263 = vpop.f32.mrf.mxu0
        %v1264 = vadd.f32 %v1048, %v1263
        %v1265 = vpop.f32.mrf.mxu0
        %v1266 = vadd.f32 %v1048, %v1265
        %1267 = vdwg.mxu0
        %1268 = vmatpush.bf16.msra.mxu0 %v1178
        %1269 = vmatpush.bf16.msra.mxu0 %v1176
        %1270 = vmatpush.bf16.msra.mxu0 %v1174
        %1271 = vmatpush.bf16.msra.mxu0 %v1172
        %1272 = vmatpush.bf16.msra.mxu0 %v1170
        %1273 = vmatpush.bf16.msra.mxu0 %v1168
        %1274 = vmatpush.bf16.msra.mxu0 %v1166
        %1275 = vmatpush.bf16.msra.mxu0 %v1164
        %1276 = vmatmul.bf16.gmra.mxu0 %v1010
        %v1277 = vpop.f32.mrf.mxu0
        %v1278 = vadd.f32 %v1259, %v1277
        %v1279 = vpop.f32.mrf.mxu0
        %v1280 = vadd.f32 %v1261, %v1279
        %1281 = vmatmul.bf16.gmra.mxu0 %v1012
        %v1282 = vpop.f32.mrf.mxu0
        %v1283 = vadd.f32 %v1264, %v1282
        %v1284 = vpop.f32.mrf.mxu0
        %v1285 = vadd.f32 %v1266, %v1284
        %1286 = vdwg.mxu0
        %v1287 = vmax.f32 %v1240, 0.0
        %v1288 = vmax.f32 %v1278, 0.0
        %v1289 = vmax.f32 %v1242, 0.0
        %v1290 = vmax.f32 %v1280, 0.0
        %v1291 = vmax.f32 %v1245, 0.0
        %v1292 = vmax.f32 %v1283, 0.0
        %v1293 = vmax.f32 %v1247, 0.0
        %v1294 = vmax.f32 %v1285, 0.0
        %v1295 = vpack.c.bf16 %v1289, %v1287
        %v1296 = vpack.c.bf16 %v1290, %v1288
        %v1297 = vpack.c.bf16 %v1293, %v1291
        %v1298 = vpack.c.bf16 %v1294, %v1292
        %v1299 = vld [vmem:[%s8] sm:$0xf]
        %v1300 = vld [vmem:[%s8 + $0x4] sm:$0xf]
        %v1301 = vld [vmem:[%s8 + $0x8] sm:$0xf]
        %v1302 = vld [vmem:[%s8 + $0xc] sm:$0xf]
        %v1303 = vld [vmem:[%s8 + $0x10] sm:$0xf]
        %v1304 = vld [vmem:[%s8 + $0x14] sm:$0xf]
        %v1305 = vld [vmem:[%s8 + $0x18] sm:$0xf]
        %v1306 = vld [vmem:[%s8 + $0x1c] sm:$0xf]
        %v1307 = vld [vmem:[%s8 + $0x20] sm:$0xf]
        %v1308 = vld [vmem:[%s8 + $0x24] sm:$0xf]
        %v1309 = vld [vmem:[%s8 + $0x28] sm:$0xf]
        %v1310 = vld [vmem:[%s8 + $0x2c] sm:$0xf]
        %v1311 = vld [vmem:[%s8 + $0x30] sm:$0xf]
        %v1312 = vld [vmem:[%s8 + $0x34] sm:$0xf]
        %v1313 = vld [vmem:[%s8 + $0x38] sm:$0xf]
        %v1314 = vld [vmem:[%s8 + $0x3c] sm:$0xf]
        %v1315 = vld [vmem:[%s8 + $0x40] sm:$0xf]
        %v1316 = vld [vmem:[%s8 + $0x44] sm:$0xf]
        %v1317 = vld [vmem:[%s8 + $0x48] sm:$0xf]
        %v1318 = vld [vmem:[%s8 + $0x4c] sm:$0xf]
        %v1319 = vld [vmem:[%s8 + $0x50] sm:$0xf]
        %v1320 = vld [vmem:[%s8 + $0x54] sm:$0xf]
        %v1321 = vld [vmem:[%s8 + $0x58] sm:$0xf]
        %v1322 = vld [vmem:[%s8 + $0x5c] sm:$0xf]
        %v1323 = vld [vmem:[%s8 + $0x60] sm:$0xf]
        %v1324 = vld [vmem:[%s8 + $0x64] sm:$0xf]
        %v1325 = vld [vmem:[%s8 + $0x68] sm:$0xf]
        %v1326 = vld [vmem:[%s8 + $0x6c] sm:$0xf]
        %v1327 = vld [vmem:[%s8 + $0x70] sm:$0xf]
        %v1328 = vld [vmem:[%s8 + $0x74] sm:$0xf]
        %v1329 = vld [vmem:[%s8 + $0x78] sm:$0xf]
        %v1330 = vld [vmem:[%s8 + $0x7c] sm:$0xf]
        %v1331 = vld [vmem:[%s9] sm:$0x1]
        %v1333 = vperm.slane %v1331, 0
        %v1367 = vunpack.c.l.b16 %v1299
        %v1368 = vunpack.c.l.b16 %v1300
        %v1369 = vunpack.c.l.b16 %v1301
        %v1370 = vunpack.c.l.b16 %v1302
        %v1371 = vunpack.c.l.b16 %v1303
        %v1372 = vunpack.c.l.b16 %v1304
        %v1373 = vunpack.c.l.b16 %v1305
        %v1374 = vunpack.c.l.b16 %v1306
        %v1375 = vunpack.c.l.b16 %v1307
        %v1376 = vunpack.c.l.b16 %v1308
        %v1377 = vunpack.c.l.b16 %v1309
        %v1378 = vunpack.c.l.b16 %v1310
        %v1379 = vunpack.c.l.b16 %v1311
        %v1380 = vunpack.c.l.b16 %v1312
        %v1381 = vunpack.c.l.b16 %v1313
        %v1382 = vunpack.c.l.b16 %v1314
        %v1383 = vunpack.c.l.b16 %v1315
        %v1384 = vunpack.c.l.b16 %v1316
        %v1385 = vunpack.c.l.b16 %v1317
        %v1386 = vunpack.c.l.b16 %v1318
        %v1387 = vunpack.c.l.b16 %v1319
        %v1388 = vunpack.c.l.b16 %v1320
        %v1389 = vunpack.c.l.b16 %v1321
        %v1390 = vunpack.c.l.b16 %v1322
        %v1391 = vunpack.c.l.b16 %v1323
        %v1392 = vunpack.c.l.b16 %v1324
        %v1393 = vunpack.c.l.b16 %v1325
        %v1394 = vunpack.c.l.b16 %v1326
        %v1395 = vunpack.c.l.b16 %v1327
        %v1396 = vunpack.c.l.b16 %v1328
        %v1397 = vunpack.c.l.b16 %v1329
        %v1398 = vunpack.c.l.b16 %v1330
        %v1399 = vpack.c.b16 %v1368, %v1367
        %v1400 = vpack.c.b16 %v1370, %v1369
        %v1401 = vpack.c.b16 %v1372, %v1371
        %v1402 = vpack.c.b16 %v1374, %v1373
        %v1403 = vpack.c.b16 %v1376, %v1375
        %v1404 = vpack.c.b16 %v1378, %v1377
        %v1405 = vpack.c.b16 %v1380, %v1379
        %v1406 = vpack.c.b16 %v1382, %v1381
        %v1407 = vpack.c.b16 %v1384, %v1383
        %v1408 = vpack.c.b16 %v1386, %v1385
        %v1409 = vpack.c.b16 %v1388, %v1387
        %v1410 = vpack.c.b16 %v1390, %v1389
        %v1411 = vpack.c.b16 %v1392, %v1391
        %v1412 = vpack.c.b16 %v1394, %v1393
        %v1413 = vpack.c.b16 %v1396, %v1395
        %v1414 = vpack.c.b16 %v1398, %v1397
        %1431 = vmatpush.bf16.msra.mxu0 %v1406
        %1432 = vmatpush.bf16.msra.mxu0 %v1405
        %1433 = vmatpush.bf16.msra.mxu0 %v1404
        %1434 = vmatpush.bf16.msra.mxu0 %v1403
        %1435 = vmatpush.bf16.msra.mxu0 %v1402
        %1436 = vmatpush.bf16.msra.mxu0 %v1401
        %1437 = vmatpush.bf16.msra.mxu0 %v1400
        %1438 = vmatpush.bf16.msra.mxu0 %v1399
        %1439 = vmatmul.bf16.gmra.mxu0 %v1295
        %v1440 = vpop.f32.mrf.mxu0
        %v1441 = vadd.f32 %v1333, %v1440
        %v1442 = vpop.f32.mrf.mxu0
        %v1443 = vadd.f32 %v1333, %v1442
        %1444 = vmatmul.bf16.gmra.mxu0 %v1297
        %v1445 = vpop.f32.mrf.mxu0
        %v1446 = vadd.f32 %v1333, %v1445
        %v1447 = vpop.f32.mrf.mxu0
        %v1448 = vadd.f32 %v1333, %v1447
        %1449 = vdwg.mxu0
        %1450 = vmatpush.bf16.msra.mxu0 %v1414
        %1451 = vmatpush.bf16.msra.mxu0 %v1413
        %1452 = vmatpush.bf16.msra.mxu0 %v1412
        %1453 = vmatpush.bf16.msra.mxu0 %v1411
        %1454 = vmatpush.bf16.msra.mxu0 %v1410
        %1455 = vmatpush.bf16.msra.mxu0 %v1409
        %1456 = vmatpush.bf16.msra.mxu0 %v1408
        %1457 = vmatpush.bf16.msra.mxu0 %v1407
        %1458 = vmatmul.bf16.gmra.mxu0 %v1296
        %v1459 = vpop.f32.mrf.mxu0
        %v1460 = vadd.f32 %v1441, %v1459
        %v1461 = vpop.f32.mrf.mxu0
        %v1462 = vadd.f32 %v1443, %v1461
        %1463 = vmatmul.bf16.gmra.mxu0 %v1298
        %v1464 = vpop.f32.mrf.mxu0
        %v1465 = vadd.f32 %v1446, %v1464
        %v1466 = vpop.f32.mrf.mxu0
        %v1467 = vadd.f32 %v1448, %v1466
        %1468 = vdwg.mxu0
        %v1469 = vmul.f32 %v1460, 1.442695
        %v1470 = vpow.pop %v1469
        %v1471 = vmul.f32 %v1462, 1.442695
        %v1472 = vpow.pop %v1471
        %v1473 = vmul.f32 %v1465, 1.442695
        %v1474 = vpow.pop %v1473
        %v1475 = vmul.f32 %v1467, 1.442695
        %v1476 = vpow.pop %v1475
        %v1477 = vmul.f32 %v1470, %v1470
        %v1478 = vmul.f32 %v1472, %v1472
        %v1479 = vmul.f32 %v1474, %v1474
        %v1480 = vmul.f32 %v1476, %v1476
        %v1481 = vmul.f32 %v1460, %v1460
        %v1482 = vmul.f32 %v1462, %v1462
        %v1483 = vmul.f32 %v1465, %v1465
        %v1484 = vmul.f32 %v1467, %v1467
        %1489 = vrot.lane.b32.xlu0 %v1481, 8
        %v1490 = vpop.permute.xlu0 %1489
        %1491 = vrot.lane.b32.xlu0 %v1482, 8
        %v1492 = vpop.permute.xlu0 %1491
        %1493 = vrot.lane.b32.xlu0 %v1483, 8
        %v1494 = vpop.permute.xlu0 %1493
        %1495 = vrot.lane.b32.xlu0 %v1484, 8
        %v1496 = vpop.permute.xlu0 %1495
        %v1501 = vadd.f32 %v1477, %v1490
        %v1502 = vadd.f32 %v1478, %v1492
        %v1503 = vadd.f32 %v1479, %v1494
        %v1504 = vadd.f32 %v1480, %v1496
        %v1505 = vmul.f32 %v1501, 0.5
        %v1506 = vmul.f32 %v1502, 0.5
        %v1507 = vmul.f32 %v1503, 0.5
        %v1508 = vmul.f32 %v1504, 0.5
        %v1509 = vsub.f32 %v1505, %v1460
        %v1510 = vsub.f32 %v1506, %v1462
        %v1511 = vsub.f32 %v1507, %v1465
        %v1512 = vsub.f32 %v1508, %v1467
        %1517 = vrot.lane.b32.xlu0 %v1509, 120
        %v1518 = vpop.permute.xlu0 %1517
        %1519 = vrot.lane.b32.xlu0 %v1510, 120
        %v1520 = vpop.permute.xlu0 %1519
        %1521 = vrot.lane.b32.xlu0 %v1511, 120
        %v1522 = vpop.permute.xlu0 %1521
        %1523 = vrot.lane.b32.xlu0 %v1512, 120
        %v1524 = vpop.permute.xlu0 %1523
        %vm1529 = vcmask 64512
        %v1530 = vsel %vm1529, %v1518, 0.0
        %1531 = vadd.xlane.f32.xlu0 %v1530
        %v1532 = vpop.xlane.xlu0 %1531
        %v1533 = vsel %vm1529, %v1520, 0.0
        %1534 = vadd.xlane.f32.xlu0 %v1533
        %v1535 = vpop.xlane.xlu0 %1534
        %v1536 = vsel %vm1529, %v1522, 0.0
        %1537 = vadd.xlane.f32.xlu0 %v1536
        %v1538 = vpop.xlane.xlu0 %1537
        %v1539 = vsel %vm1529, %v1524, 0.0
        %1540 = vadd.xlane.f32.xlu0 %v1539
        %v1541 = vpop.xlane.xlu0 %1540
        %vm1542 = vcmask 7168
        %1543 = vst.msk [vmem:[%s620] sm:$0xff] %vm1542, %v1532
        %1544 = vst.msk [vmem:[%s620 + $0x8] sm:$0xff] %vm1542, %v1535
        %1545 = vst.msk [vmem:[%s620 + $0x10] sm:$0xff] %vm1542, %v1538
        %1546 = vst.msk [vmem:[%s620 + $0x18] sm:$0xff] %vm1542, %v1541
        %v1547 = vld [vmem:[%s608] sm:$0xff]
        %v1548 = vld [vmem:[%s608 + $0x8] sm:$0xff]
        %v1549 = vld [vmem:[%s608 + $0x10] sm:$0xff]
        %v1550 = vld [vmem:[%s608 + $0x18] sm:$0xff]
        %1555 = vrot.lane.b32.xlu0 %v1547, 8
        %v1556 = vpop.permute.xlu0 %1555
        %1557 = vrot.lane.b32.xlu0 %v1548, 8
        %v1558 = vpop.permute.xlu0 %1557
        %1559 = vrot.lane.b32.xlu0 %v1549, 8
        %v1560 = vpop.permute.xlu0 %1559
        %1561 = vrot.lane.b32.xlu0 %v1550, 8
        %v1562 = vpop.permute.xlu0 %1561
        %v1567 = vmul.f32 %v1470, %v1556
        %v1568 = vmul.f32 %v1472, %v1558
        %v1569 = vmul.f32 %v1474, %v1560
        %v1570 = vmul.f32 %v1476, %v1562
        %1575 = vrot.lane.b32.xlu0 %v1567, 120
        %v1576 = vpop.permute.xlu0 %1575
        %1577 = vrot.lane.b32.xlu0 %v1568, 120
        %v1578 = vpop.permute.xlu0 %1577
        %1579 = vrot.lane.b32.xlu0 %v1569, 120
        %v1580 = vpop.permute.xlu0 %1579
        %1581 = vrot.lane.b32.xlu0 %v1570, 120
        %v1582 = vpop.permute.xlu0 %1581
        %v1587 = vadd.f32 %v1460, %v1576
        %v1588 = vadd.f32 %v1462, %v1578
        %v1589 = vadd.f32 %v1465, %v1580
        %v1590 = vadd.f32 %v1467, %v1582
        %v1591 = vpack.c.bf16 %v1588, %v1587
        %v1592 = vpack.c.bf16 %v1590, %v1589
        %v1593 = vld [vmem:[%s10] sm:$0xff]
        %v1594 = vld [vmem:[%s11] sm:$0x3]
        %v1596 = vperm.slane %v1594, 0
        %v1597 = vperm.slane %v1594, 1
        %v1601 = vunpack.c.l.b16 %v1593
        %v1602 = vunpack.c.h.b16 %v1593
        %v1603 = vpack.c.b16 %v1601, %v1601
        %v1604 = vpack.c.b16 %v1602, %v1602
        %v1606 = vsel %vm1529, %v1591, 0
        %v1609 = vsel %vm1529, %v1592, 0
        %vm1611 = vcmask 1043456
        %v1613 = vsel %vm1611, %v1603, 0
        %v1616 = vsel %vm1611, %v1604, 0
        %1618 = vmatpush.bf16.msra.mxu0 0
        %1619 = vmatpush.bf16.msra.mxu0 0
        %1620 = vmatpush.bf16.msra.mxu0 0
        %1621 = vmatpush.bf16.msra.mxu0 0
        %1622 = vmatpush.bf16.msra.mxu0 0
        %1623 = vmatpush.bf16.msra.mxu0 0
        %1624 = vmatpush.bf16.msra.mxu0 0
        %1625 = vmatpush.bf16.msra.mxu0 %v1613
        %1626 = vmatmul.bf16.gmra.mxu0 %v1606
        %v1627 = vpop.f32.mrf.mxu0
        %v1628 = vadd.f32 %v1596, %v1627
        %v1629 = vpop.f32.mrf.mxu0
        %v1630 = vadd.f32 %v1596, %v1629
        %1631 = vmatmul.bf16.gmra.mxu0 %v1609
        %v1632 = vpop.f32.mrf.mxu0
        %v1633 = vadd.f32 %v1596, %v1632
        %v1634 = vpop.f32.mrf.mxu0
        %v1635 = vadd.f32 %v1596, %v1634
        %1636 = vdwg.mxu0
        %1637 = vmatpush.bf16.msra.mxu0 0
        %1638 = vmatpush.bf16.msra.mxu0 0
        %1639 = vmatpush.bf16.msra.mxu0 0
        %1640 = vmatpush.bf16.msra.mxu0 0
        %1641 = vmatpush.bf16.msra.mxu0 0
        %1642 = vmatpush.bf16.msra.mxu0 0
        %1643 = vmatpush.bf16.msra.mxu0 0
        %1644 = vmatpush.bf16.msra.mxu0 %v1616
        %1645 = vmatmul.bf16.gmra.mxu0 %v1606
        %v1646 = vpop.f32.mrf.mxu0
        %v1647 = vadd.f32 %v1597, %v1646
        %v1648 = vpop.f32.mrf.mxu0
        %v1649 = vadd.f32 %v1597, %v1648
        %1650 = vmatmul.bf16.gmra.mxu0 %v1609
        %v1651 = vpop.f32.mrf.mxu0
        %v1652 = vadd.f32 %v1597, %v1651
        %v1653 = vpop.f32.mrf.mxu0
        %v1654 = vadd.f32 %v1597, %v1653
        %1655 = vdwg.mxu0
        %v1656 = vmax.f32 %v1628, 0.0
        %v1657 = vmax.f32 %v1647, 0.0
        %v1658 = vmax.f32 %v1630, 0.0
        %v1659 = vmax.f32 %v1649, 0.0
        %v1660 = vmax.f32 %v1633, 0.0
        %v1661 = vmax.f32 %v1652, 0.0
        %v1662 = vmax.f32 %v1635, 0.0
        %v1663 = vmax.f32 %v1654, 0.0
        %v1664 = vpack.c.bf16 %v1658, %v1656
        %v1665 = vpack.c.bf16 %v1659, %v1657
        %v1666 = vpack.c.bf16 %v1662, %v1660
        %v1667 = vpack.c.bf16 %v1663, %v1661
        %v1668 = vld [vmem:[#allocation4] sm:$0xff]
        %v1669 = vld [vmem:[#allocation4 + $0x8] sm:$0xff]
        %v1670 = vld [vmem:[#allocation4 + $0x10] sm:$0xff]
        %v1671 = vld [vmem:[#allocation4 + $0x18] sm:$0xff]
        %v1672 = vld [vmem:[#allocation4 + $0x20] sm:$0xff]
        %v1673 = vld [vmem:[#allocation4 + $0x28] sm:$0xff]
        %v1674 = vld [vmem:[#allocation4 + $0x30] sm:$0xff]
        %v1675 = vld [vmem:[#allocation4 + $0x38] sm:$0xff]
        %v1676 = vld [vmem:[#allocation4 + $0x40] sm:$0xff]
        %v1677 = vld [vmem:[#allocation4 + $0x48] sm:$0xff]
        %v1678 = vld [vmem:[#allocation4 + $0x50] sm:$0xff]
        %v1679 = vld [vmem:[#allocation4 + $0x58] sm:$0xff]
        %v1680 = vld [vmem:[#allocation4 + $0x60] sm:$0xff]
        %v1681 = vld [vmem:[#allocation4 + $0x68] sm:$0xff]
        %v1682 = vld [vmem:[#allocation4 + $0x70] sm:$0xff]
        %v1683 = vld [vmem:[#allocation4 + $0x78] sm:$0xff]
        %v1684 = vld [vmem:[#allocation4 + $0x80] sm:$0xff]
        %v1685 = vld [vmem:[#allocation4 + $0x88] sm:$0xff]
        %v1686 = vld [vmem:[#allocation4 + $0x90] sm:$0xff]
        %v1687 = vld [vmem:[#allocation4 + $0x98] sm:$0xff]
        %v1688 = vld [vmem:[#allocation4 + $0xa0] sm:$0xff]
        %v1689 = vld [vmem:[#allocation4 + $0xa8] sm:$0xff]
        %v1690 = vld [vmem:[#allocation4 + $0xb0] sm:$0xff]
        %v1691 = vld [vmem:[#allocation4 + $0xb8] sm:$0xff]
        %v1692 = vld [vmem:[#allocation4 + $0xc0] sm:$0xff]
        %v1693 = vld [vmem:[#allocation4 + $0xc8] sm:$0xff]
        %v1694 = vld [vmem:[#allocation4 + $0xd0] sm:$0xff]
        %v1695 = vld [vmem:[#allocation4 + $0xd8] sm:$0xff]
        %v1696 = vld [vmem:[#allocation4 + $0xe0] sm:$0xff]
        %v1697 = vld [vmem:[#allocation4 + $0xe8] sm:$0xff]
        %v1698 = vld [vmem:[#allocation4 + $0xf0] sm:$0xff]
        %v1699 = vld [vmem:[#allocation4 + $0xf8] sm:$0xff]
        %v1700 = vld [vmem:[%s13] sm:$0x3]
        %v1702 = vperm.slane %v1700, 0
        %v1703 = vperm.slane %v1700, 1
        %v1738 = vunpack.c.l.b16 %v1668
        %v1739 = vunpack.c.h.b16 %v1668
        %v1740 = vunpack.c.l.b16 %v1669
        %v1741 = vunpack.c.h.b16 %v1669
        %v1742 = vunpack.c.l.b16 %v1670
        %v1743 = vunpack.c.h.b16 %v1670
        %v1744 = vunpack.c.l.b16 %v1671
        %v1745 = vunpack.c.h.b16 %v1671
        %v1746 = vunpack.c.l.b16 %v1672
        %v1747 = vunpack.c.h.b16 %v1672
        %v1748 = vunpack.c.l.b16 %v1673
        %v1749 = vunpack.c.h.b16 %v1673
        %v1750 = vunpack.c.l.b16 %v1674
        %v1751 = vunpack.c.h.b16 %v1674
        %v1752 = vunpack.c.l.b16 %v1675
        %v1753 = vunpack.c.h.b16 %v1675
        %v1754 = vunpack.c.l.b16 %v1676
        %v1755 = vunpack.c.h.b16 %v1676
        %v1756 = vunpack.c.l.b16 %v1677
        %v1757 = vunpack.c.h.b16 %v1677
        %v1758 = vunpack.c.l.b16 %v1678
        %v1759 = vunpack.c.h.b16 %v1678
        %v1760 = vunpack.c.l.b16 %v1679
        %v1761 = vunpack.c.h.b16 %v1679
        %v1762 = vunpack.c.l.b16 %v1680
        %v1763 = vunpack.c.h.b16 %v1680
        %v1764 = vunpack.c.l.b16 %v1681
        %v1765 = vunpack.c.h.b16 %v1681
        %v1766 = vunpack.c.l.b16 %v1682
        %v1767 = vunpack.c.h.b16 %v1682
        %v1768 = vunpack.c.l.b16 %v1683
        %v1769 = vunpack.c.h.b16 %v1683
        %v1770 = vunpack.c.l.b16 %v1684
        %v1771 = vunpack.c.h.b16 %v1684
        %v1772 = vunpack.c.l.b16 %v1685
        %v1773 = vunpack.c.h.b16 %v1685
        %v1774 = vunpack.c.l.b16 %v1686
        %v1775 = vunpack.c.h.b16 %v1686
        %v1776 = vunpack.c.l.b16 %v1687
        %v1777 = vunpack.c.h.b16 %v1687
        %v1778 = vunpack.c.l.b16 %v1688
        %v1779 = vunpack.c.h.b16 %v1688
        %v1780 = vunpack.c.l.b16 %v1689
        %v1781 = vunpack.c.h.b16 %v1689
        %v1782 = vunpack.c.l.b16 %v1690
        %v1783 = vunpack.c.h.b16 %v1690
        %v1784 = vunpack.c.l.b16 %v1691
        %v1785 = vunpack.c.h.b16 %v1691
        %v1786 = vunpack.c.l.b16 %v1692
        %v1787 = vunpack.c.h.b16 %v1692
        %v1788 = vunpack.c.l.b16 %v1693
        %v1789 = vunpack.c.h.b16 %v1693
        %v1790 = vunpack.c.l.b16 %v1694
        %v1791 = vunpack.c.h.b16 %v1694
        %v1792 = vunpack.c.l.b16 %v1695
        %v1793 = vunpack.c.h.b16 %v1695
        %v1794 = vunpack.c.l.b16 %v1696
        %v1795 = vunpack.c.h.b16 %v1696
        %v1796 = vunpack.c.l.b16 %v1697
        %v1797 = vunpack.c.h.b16 %v1697
        %v1798 = vunpack.c.l.b16 %v1698
        %v1799 = vunpack.c.h.b16 %v1698
        %v1800 = vunpack.c.l.b16 %v1699
        %v1801 = vunpack.c.h.b16 %v1699
        %v1802 = vpack.c.b16 %v1740, %v1738
        %v1803 = vpack.c.b16 %v1741, %v1739
        %v1804 = vpack.c.b16 %v1744, %v1742
        %v1805 = vpack.c.b16 %v1745, %v1743
        %v1806 = vpack.c.b16 %v1748, %v1746
        %v1807 = vpack.c.b16 %v1749, %v1747
        %v1808 = vpack.c.b16 %v1752, %v1750
        %v1809 = vpack.c.b16 %v1753, %v1751
        %v1810 = vpack.c.b16 %v1756, %v1754
        %v1811 = vpack.c.b16 %v1757, %v1755
        %v1812 = vpack.c.b16 %v1760, %v1758
        %v1813 = vpack.c.b16 %v1761, %v1759
        %v1814 = vpack.c.b16 %v1764, %v1762
        %v1815 = vpack.c.b16 %v1765, %v1763
        %v1816 = vpack.c.b16 %v1768, %v1766
        %v1817 = vpack.c.b16 %v1769, %v1767
        %v1818 = vpack.c.b16 %v1772, %v1770
        %v1819 = vpack.c.b16 %v1773, %v1771
        %v1820 = vpack.c.b16 %v1776, %v1774
        %v1821 = vpack.c.b16 %v1777, %v1775
        %v1822 = vpack.c.b16 %v1780, %v1778
        %v1823 = vpack.c.b16 %v1781, %v1779
        %v1824 = vpack.c.b16 %v1784, %v1782
        %v1825 = vpack.c.b16 %v1785, %v1783
        %v1826 = vpack.c.b16 %v1788, %v1786
        %v1827 = vpack.c.b16 %v1789, %v1787
        %v1828 = vpack.c.b16 %v1792, %v1790
        %v1829 = vpack.c.b16 %v1793, %v1791
        %v1830 = vpack.c.b16 %v1796, %v1794
        %v1831 = vpack.c.b16 %v1797, %v1795
        %v1832 = vpack.c.b16 %v1800, %v1798
        %v1833 = vpack.c.b16 %v1801, %v1799
        %1866 = vmatpush.bf16.msra.mxu0 %v1816
        %1867 = vmatpush.bf16.msra.mxu0 %v1814
        %1868 = vmatpush.bf16.msra.mxu0 %v1812
        %1869 = vmatpush.bf16.msra.mxu0 %v1810
        %1870 = vmatpush.bf16.msra.mxu0 %v1808
        %1871 = vmatpush.bf16.msra.mxu0 %v1806
        %1872 = vmatpush.bf16.msra.mxu0 %v1804
        %1873 = vmatpush.bf16.msra.mxu0 %v1802
        %1874 = vmatmul.bf16.gmra.mxu0 %v1664
        %v1875 = vpop.f32.mrf.mxu0
        %v1876 = vadd.f32 %v1702, %v1875
        %v1877 = vpop.f32.mrf.mxu0
        %v1878 = vadd.f32 %v1702, %v1877
        %1879 = vmatmul.bf16.gmra.mxu0 %v1666
        %v1880 = vpop.f32.mrf.mxu0
        %v1881 = vadd.f32 %v1702, %v1880
        %v1882 = vpop.f32.mrf.mxu0
        %v1883 = vadd.f32 %v1702, %v1882
        %1884 = vdwg.mxu0
        %1885 = vmatpush.bf16.msra.mxu0 %v1832
        %1886 = vmatpush.bf16.msra.mxu0 %v1830
        %1887 = vmatpush.bf16.msra.mxu0 %v1828
        %1888 = vmatpush.bf16.msra.mxu0 %v1826
        %1889 = vmatpush.bf16.msra.mxu0 %v1824
        %1890 = vmatpush.bf16.msra.mxu0 %v1822
        %1891 = vmatpush.bf16.msra.mxu0 %v1820
        %1892 = vmatpush.bf16.msra.mxu0 %v1818
        %1893 = vmatmul.bf16.gmra.mxu0 %v1665
        %v1894 = vpop.f32.mrf.mxu0
        %v1895 = vadd.f32 %v1876, %v1894
        %v1896 = vpop.f32.mrf.mxu0
        %v1897 = vadd.f32 %v1878, %v1896
        %1898 = vmatmul.bf16.gmra.mxu0 %v1667
        %v1899 = vpop.f32.mrf.mxu0
        %v1900 = vadd.f32 %v1881, %v1899
        %v1901 = vpop.f32.mrf.mxu0
        %v1902 = vadd.f32 %v1883, %v1901
        %1903 = vdwg.mxu0
        %1904 = vmatpush.bf16.msra.mxu0 %v1817
        %1905 = vmatpush.bf16.msra.mxu0 %v1815
        %1906 = vmatpush.bf16.msra.mxu0 %v1813
        %1907 = vmatpush.bf16.msra.mxu0 %v1811
        %1908 = vmatpush.bf16.msra.mxu0 %v1809
        %1909 = vmatpush.bf16.msra.mxu0 %v1807
        %1910 = vmatpush.bf16.msra.mxu0 %v1805
        %1911 = vmatpush.bf16.msra.mxu0 %v1803
        %1912 = vmatmul.bf16.gmra.mxu0 %v1664
        %v1913 = vpop.f32.mrf.mxu0
        %v1914 = vadd.f32 %v1703, %v1913
        %v1915 = vpop.f32.mrf.mxu0
        %v1916 = vadd.f32 %v1703, %v1915
        %1917 = vmatmul.bf16.gmra.mxu0 %v1666
        %v1918 = vpop.f32.mrf.mxu0
        %v1919 = vadd.f32 %v1703, %v1918
        %v1920 = vpop.f32.mrf.mxu0
        %v1921 = vadd.f32 %v1703, %v1920
        %1922 = vdwg.mxu0
        %1923 = vmatpush.bf16.msra.mxu0 %v1833
        %1924 = vmatpush.bf16.msra.mxu0 %v1831
        %1925 = vmatpush.bf16.msra.mxu0 %v1829
        %1926 = vmatpush.bf16.msra.mxu0 %v1827
        %1927 = vmatpush.bf16.msra.mxu0 %v1825
        %1928 = vmatpush.bf16.msra.mxu0 %v1823
        %1929 = vmatpush.bf16.msra.mxu0 %v1821
        %1930 = vmatpush.bf16.msra.mxu0 %v1819
        %1931 = vmatmul.bf16.gmra.mxu0 %v1665
        %v1932 = vpop.f32.mrf.mxu0
        %v1933 = vadd.f32 %v1914, %v1932
        %v1934 = vpop.f32.mrf.mxu0
        %v1935 = vadd.f32 %v1916, %v1934
        %1936 = vmatmul.bf16.gmra.mxu0 %v1667
        %v1937 = vpop.f32.mrf.mxu0
        %v1938 = vadd.f32 %v1919, %v1937
        %v1939 = vpop.f32.mrf.mxu0
        %v1940 = vadd.f32 %v1921, %v1939
        %1941 = vdwg.mxu0
        %v1942 = vmax.f32 %v1895, 0.0
        %v1943 = vmax.f32 %v1933, 0.0
        %v1944 = vmax.f32 %v1897, 0.0
        %v1945 = vmax.f32 %v1935, 0.0
        %v1946 = vmax.f32 %v1900, 0.0
        %v1947 = vmax.f32 %v1938, 0.0
        %v1948 = vmax.f32 %v1902, 0.0
        %v1949 = vmax.f32 %v1940, 0.0
        %v1950 = vpack.c.bf16 %v1944, %v1942
        %v1951 = vpack.c.bf16 %v1945, %v1943
        %v1952 = vpack.c.bf16 %v1948, %v1946
        %v1953 = vpack.c.bf16 %v1949, %v1947
        %v1954 = vld [vmem:[%s14] sm:$0xf]
        %v1955 = vld [vmem:[%s14 + $0x4] sm:$0xf]
        %v1956 = vld [vmem:[%s14 + $0x8] sm:$0xf]
        %v1957 = vld [vmem:[%s14 + $0xc] sm:$0xf]
        %v1958 = vld [vmem:[%s14 + $0x10] sm:$0xf]
        %v1959 = vld [vmem:[%s14 + $0x14] sm:$0xf]
        %v1960 = vld [vmem:[%s14 + $0x18] sm:$0xf]
        %v1961 = vld [vmem:[%s14 + $0x1c] sm:$0xf]
        %v1962 = vld [vmem:[%s14 + $0x20] sm:$0xf]
        %v1963 = vld [vmem:[%s14 + $0x24] sm:$0xf]
        %v1964 = vld [vmem:[%s14 + $0x28] sm:$0xf]
        %v1965 = vld [vmem:[%s14 + $0x2c] sm:$0xf]
        %v1966 = vld [vmem:[%s14 + $0x30] sm:$0xf]
        %v1967 = vld [vmem:[%s14 + $0x34] sm:$0xf]
        %v1968 = vld [vmem:[%s14 + $0x38] sm:$0xf]
        %v1969 = vld [vmem:[%s14 + $0x3c] sm:$0xf]
        %v1970 = vld [vmem:[%s14 + $0x40] sm:$0xf]
        %v1971 = vld [vmem:[%s14 + $0x44] sm:$0xf]
        %v1972 = vld [vmem:[%s14 + $0x48] sm:$0xf]
        %v1973 = vld [vmem:[%s14 + $0x4c] sm:$0xf]
        %v1974 = vld [vmem:[%s14 + $0x50] sm:$0xf]
        %v1975 = vld [vmem:[%s14 + $0x54] sm:$0xf]
        %v1976 = vld [vmem:[%s14 + $0x58] sm:$0xf]
        %v1977 = vld [vmem:[%s14 + $0x5c] sm:$0xf]
        %v1978 = vld [vmem:[%s14 + $0x60] sm:$0xf]
        %v1979 = vld [vmem:[%s14 + $0x64] sm:$0xf]
        %v1980 = vld [vmem:[%s14 + $0x68] sm:$0xf]
        %v1981 = vld [vmem:[%s14 + $0x6c] sm:$0xf]
        %v1982 = vld [vmem:[%s14 + $0x70] sm:$0xf]
        %v1983 = vld [vmem:[%s14 + $0x74] sm:$0xf]
        %v1984 = vld [vmem:[%s14 + $0x78] sm:$0xf]
        %v1985 = vld [vmem:[%s14 + $0x7c] sm:$0xf]
        %v1986 = vld [vmem:[%s15] sm:$0x1]
        %v1988 = vperm.slane %v1986, 0
        %v2022 = vunpack.c.l.b16 %v1954
        %v2023 = vunpack.c.l.b16 %v1955
        %v2024 = vunpack.c.l.b16 %v1956
        %v2025 = vunpack.c.l.b16 %v1957
        %v2026 = vunpack.c.l.b16 %v1958
        %v2027 = vunpack.c.l.b16 %v1959
        %v2028 = vunpack.c.l.b16 %v1960
        %v2029 = vunpack.c.l.b16 %v1961
        %v2030 = vunpack.c.l.b16 %v1962
        %v2031 = vunpack.c.l.b16 %v1963
        %v2032 = vunpack.c.l.b16 %v1964
        %v2033 = vunpack.c.l.b16 %v1965
        %v2034 = vunpack.c.l.b16 %v1966
        %v2035 = vunpack.c.l.b16 %v1967
        %v2036 = vunpack.c.l.b16 %v1968
        %v2037 = vunpack.c.l.b16 %v1969
        %v2038 = vunpack.c.l.b16 %v1970
        %v2039 = vunpack.c.l.b16 %v1971
        %v2040 = vunpack.c.l.b16 %v1972
        %v2041 = vunpack.c.l.b16 %v1973
        %v2042 = vunpack.c.l.b16 %v1974
        %v2043 = vunpack.c.l.b16 %v1975
        %v2044 = vunpack.c.l.b16 %v1976
        %v2045 = vunpack.c.l.b16 %v1977
        %v2046 = vunpack.c.l.b16 %v1978
        %v2047 = vunpack.c.l.b16 %v1979
        %v2048 = vunpack.c.l.b16 %v1980
        %v2049 = vunpack.c.l.b16 %v1981
        %v2050 = vunpack.c.l.b16 %v1982
        %v2051 = vunpack.c.l.b16 %v1983
        %v2052 = vunpack.c.l.b16 %v1984
        %v2053 = vunpack.c.l.b16 %v1985
        %v2054 = vpack.c.b16 %v2023, %v2022
        %v2055 = vpack.c.b16 %v2025, %v2024
        %v2056 = vpack.c.b16 %v2027, %v2026
        %v2057 = vpack.c.b16 %v2029, %v2028
        %v2058 = vpack.c.b16 %v2031, %v2030
        %v2059 = vpack.c.b16 %v2033, %v2032
        %v2060 = vpack.c.b16 %v2035, %v2034
        %v2061 = vpack.c.b16 %v2037, %v2036
        %v2062 = vpack.c.b16 %v2039, %v2038
        %v2063 = vpack.c.b16 %v2041, %v2040
        %v2064 = vpack.c.b16 %v2043, %v2042
        %v2065 = vpack.c.b16 %v2045, %v2044
        %v2066 = vpack.c.b16 %v2047, %v2046
        %v2067 = vpack.c.b16 %v2049, %v2048
        %v2068 = vpack.c.b16 %v2051, %v2050
        %v2069 = vpack.c.b16 %v2053, %v2052
        %2086 = vmatpush.bf16.msra.mxu0 %v2061
        %2087 = vmatpush.bf16.msra.mxu0 %v2060
        %2088 = vmatpush.bf16.msra.mxu0 %v2059
        %2089 = vmatpush.bf16.msra.mxu0 %v2058
        %2090 = vmatpush.bf16.msra.mxu0 %v2057
        %2091 = vmatpush.bf16.msra.mxu0 %v2056
        %2092 = vmatpush.bf16.msra.mxu0 %v2055
        %2093 = vmatpush.bf16.msra.mxu0 %v2054
        %2094 = vmatmul.bf16.gmra.mxu0 %v1950
        %v2095 = vpop.f32.mrf.mxu0
        %v2096 = vadd.f32 %v1988, %v2095
        %v2097 = vpop.f32.mrf.mxu0
        %v2098 = vadd.f32 %v1988, %v2097
        %2099 = vmatmul.bf16.gmra.mxu0 %v1952
        %v2100 = vpop.f32.mrf.mxu0
        %v2101 = vadd.f32 %v1988, %v2100
        %v2102 = vpop.f32.mrf.mxu0
        %v2103 = vadd.f32 %v1988, %v2102
        %2104 = vdwg.mxu0
        %2105 = vmatpush.bf16.msra.mxu0 %v2069
        %2106 = vmatpush.bf16.msra.mxu0 %v2068
        %2107 = vmatpush.bf16.msra.mxu0 %v2067
        %2108 = vmatpush.bf16.msra.mxu0 %v2066
        %2109 = vmatpush.bf16.msra.mxu0 %v2065
        %2110 = vmatpush.bf16.msra.mxu0 %v2064
        %2111 = vmatpush.bf16.msra.mxu0 %v2063
        %2112 = vmatpush.bf16.msra.mxu0 %v2062
        %2113 = vmatmul.bf16.gmra.mxu0 %v1951
        %v2114 = vpop.f32.mrf.mxu0
        %v2115 = vadd.f32 %v2096, %v2114
        %v2116 = vpop.f32.mrf.mxu0
        %v2117 = vadd.f32 %v2098, %v2116
        %2118 = vmatmul.bf16.gmra.mxu0 %v1953
        %v2119 = vpop.f32.mrf.mxu0
        %v2120 = vadd.f32 %v2101, %v2119
        %v2121 = vpop.f32.mrf.mxu0
        %v2122 = vadd.f32 %v2103, %v2121
        %2123 = vdwg.mxu0
        %v2124 = vxor.u32 %v2115, 2147483648
        %v2125 = vxor.u32 %v2117, 2147483648
        %v2126 = vxor.u32 %v2120, 2147483648
        %v2127 = vxor.u32 %v2122, 2147483648
        %v2128 = vmul.f32 %v2124, 1.442695
        %v2129 = vpow.pop %v2128
        %v2130 = vmul.f32 %v2125, 1.442695
        %v2131 = vpow.pop %v2130
        %v2132 = vmul.f32 %v2126, 1.442695
        %v2133 = vpow.pop %v2132
        %v2134 = vmul.f32 %v2127, 1.442695
        %v2135 = vpow.pop %v2134
        %v2136 = vadd.f32 %v2129, 1.0
        %v2137 = vadd.f32 %v2131, 1.0
        %v2138 = vadd.f32 %v2133, 1.0
        %v2139 = vadd.f32 %v2135, 1.0
        %v2140 = vrcp.pop %v2136
        %v2141 = vmul.f32 %v2136, %v2140
        %v2142 = vsub.f32 1.0, %v2141
        %v2143 = vmul.f32 %v2140, %v2142
        %v2144 = vadd.f32 %v2140, %v2143
        %vm2145 = vweird.f32 %v2136
        %vm2146 = vweird.f32 %v2140
        %vm2147 = vmor %vm2145, %vm2146
        %v2148 = vsel %vm2147, %v2140, %v2144
        %v2149 = vand.u32 2147483647, %v2136
        %vm2150 = vcmp.eq.f32.partialorder %v2149, 8.507059e+37
        %v2151 = vand.u32 %v2136, 2147483648
        %v2152 = vor.u32 1.1754944e-38, %v2151
        %v2153 = vsel %vm2150, %v2152, %v2148
        %v2154 = vmul.f32 1.0, %v2153
        %v2155 = vrcp.pop %v2137
        %v2156 = vmul.f32 %v2137, %v2155
        %v2157 = vsub.f32 1.0, %v2156
        %v2158 = vmul.f32 %v2155, %v2157
        %v2159 = vadd.f32 %v2155, %v2158
        %vm2160 = vweird.f32 %v2137
        %vm2161 = vweird.f32 %v2155
        %vm2162 = vmor %vm2160, %vm2161
        %v2163 = vsel %vm2162, %v2155, %v2159
        %v2164 = vand.u32 2147483647, %v2137
        %vm2165 = vcmp.eq.f32.partialorder %v2164, 8.507059e+37
        %v2166 = vand.u32 %v2137, 2147483648
        %v2167 = vor.u32 1.1754944e-38, %v2166
        %v2168 = vsel %vm2165, %v2167, %v2163
        %v2169 = vmul.f32 1.0, %v2168
        %v2170 = vrcp.pop %v2138
        %v2171 = vmul.f32 %v2138, %v2170
        %v2172 = vsub.f32 1.0, %v2171
        %v2173 = vmul.f32 %v2170, %v2172
        %v2174 = vadd.f32 %v2170, %v2173
        %vm2175 = vweird.f32 %v2138
        %vm2176 = vweird.f32 %v2170
        %vm2177 = vmor %vm2175, %vm2176
        %v2178 = vsel %vm2177, %v2170, %v2174
        %v2179 = vand.u32 2147483647, %v2138
        %vm2180 = vcmp.eq.f32.partialorder %v2179, 8.507059e+37
        %v2181 = vand.u32 %v2138, 2147483648
        %v2182 = vor.u32 1.1754944e-38, %v2181
        %v2183 = vsel %vm2180, %v2182, %v2178
        %v2184 = vmul.f32 1.0, %v2183
        %v2185 = vrcp.pop %v2139
        %v2186 = vmul.f32 %v2139, %v2185
        %v2187 = vsub.f32 1.0, %v2186
        %v2188 = vmul.f32 %v2185, %v2187
        %v2189 = vadd.f32 %v2185, %v2188
        %vm2190 = vweird.f32 %v2139
        %vm2191 = vweird.f32 %v2185
        %vm2192 = vmor %vm2190, %vm2191
        %v2193 = vsel %vm2192, %v2185, %v2189
        %v2194 = vand.u32 2147483647, %v2139
        %vm2195 = vcmp.eq.f32.partialorder %v2194, 8.507059e+37
        %v2196 = vand.u32 %v2139, 2147483648
        %v2197 = vor.u32 1.1754944e-38, %v2196
        %v2198 = vsel %vm2195, %v2197, %v2193
        %v2199 = vmul.f32 1.0, %v2198
        %vm2200 = vcmask 15360
        %2201 = vst.msk [vmem:[%s614] sm:$0xff] %vm2200, %v2154
        %2202 = vst.msk [vmem:[%s614 + $0x8] sm:$0xff] %vm2200, %v2169
        %2203 = vst.msk [vmem:[%s614 + $0x10] sm:$0xff] %vm2200, %v2184
        %2204 = vst.msk [vmem:[%s614 + $0x18] sm:$0xff] %vm2200, %v2199
        %s2205 = smul.u32 4, %s31
        %p2206 = scmp.lt.s32.totalorder %s2205, 7
        %s2207 = scalar_select %p2206, %s2205, 7
        %s2208 = smul.addr %s2207, 8
        %s2209 = scalar_lea.vmem %s16, %s2208
        %s2210 = smul.u32 4, %s31
        %p2211 = scmp.lt.s32.totalorder %s2210, 7
        %s2212 = scalar_select %p2211, %s2210, 7
        %s2213 = smul.addr %s2212, 8
        %s2214 = scalar_lea.vmem %s17, %s2213
        // Predicated region
        $region93: #{tpu_custom_call.1} parent=83 // pred_check
          %p2215 = pneg %p395
        $region94: #{tpu_custom_call.1} parent=83 // pred_check_branch
          %2217 = sbr.rel (%p2215) target = $region96
        $region95: #{tpu_custom_call.1} parent=83 // pred_region
          %s2218 = smul.u32 4, %s31
        $region96: #{tpu_custom_call.1} parent=83 // pred_fallthru
          _
        // Predicated region
        $region97: #{tpu_custom_call.1} parent=83 // pred_check
          %p2219 = pneg %p421
        $region98: #{tpu_custom_call.1} parent=83 // pred_check_branch
          %2221 = sbr.rel (%p2219) target = $region100
        $region99: #{tpu_custom_call.1} parent=83 // pred_region
          %s2222 = smul.u32 4, %s31
        $region100: #{tpu_custom_call.1} parent=83 // pred_fallthru
          _
      $region84: #{tpu_custom_call.1} parent=5 // pred_fallthru
        _
      %p2223 = scmp.le.s32.totalorder 2, %s26
      // Predicated region
      $region101: #{tpu_custom_call.1} parent=5 // pred_check
        %p2224 = pneg %p2223
      $region102: #{tpu_custom_call.1} parent=5 // pred_check_branch
        %2226 = sbr.rel (%p2224) target = $region104
      $region103: #{tpu_custom_call.1} parent=5 // pred_region
        %s2227 = ssub.s32 %s26, 2
        // Predicated region
        $region105: #{tpu_custom_call.1} parent=103 // pred_check
          %p2228 = pneg %p401
        $region106: #{tpu_custom_call.1} parent=103 // pred_check_branch
          %2230 = sbr.rel (%p2228) target = $region108
        $region107: #{tpu_custom_call.1} parent=103 // pred_region
          %s2231 = smul.u32 4, %s32
          %p2232 = scmp.lt.s32.totalorder %s2231, 7
          %s2233 = scalar_select %p2232, %s2231, 7
          %s2234 = smul.addr %s2233, 8
          %s2235 = scalar_lea.vmem %s16, %s2234
        $region108: #{tpu_custom_call.1} parent=103 // pred_fallthru
          _
        // Predicated region
        $region109: #{tpu_custom_call.1} parent=103 // pred_check
          %p2236 = pneg %p427
        $region110: #{tpu_custom_call.1} parent=103 // pred_check_branch
          %2238 = sbr.rel (%p2236) target = $region112
        $region111: #{tpu_custom_call.1} parent=103 // pred_region
          %s2239 = smul.u32 4, %s32
          %p2240 = scmp.lt.s32.totalorder %s2239, 7
          %s2241 = scalar_select %p2240, %s2239, 7
          %s2242 = smul.addr %s2241, 8
          %s2243 = scalar_lea.vmem %s17, %s2242
        $region112: #{tpu_custom_call.1} parent=103 // pred_fallthru
          _
      $region104: #{tpu_custom_call.1} parent=5 // pred_fallthru
        _
    $region6: #{tpu_custom_call.1} parent=1 // loop_footer
      %s30 = sadd.s32 1, %s26
    $region7: #{tpu_custom_call.1} parent=1 // loop_footer_branch
      %25 = sbr.rel target = $region3
    $region8: #{tpu_custom_call.1} parent=1 // loop_exit
      _
    %2244 = vsyncpa [#allocation3], 1
    %s2245 = scalar_lea.sflag [#allocation3], 1
    %2246 = vsyncpa %s2245, 1
    %2247 = vsyncpa [#allocation5], 1

</llo_original>
